<compile_context>
chip_gen: v5e
topology: v5e:2x2
jax: 0.10.0
libtpu: 0.0.40
codegen_flags: <defaults>
</compile_context>

<pallas_src>
import functools

import jax
import jax.numpy as jnp
from jax import lax
from jax.experimental import pallas as pl
from jax.experimental.pallas import tpu as pltpu

NEG_SLOPE = 0.2
BN_EPS = 1e-5
C1 = 64            # conv1 out channels
C2 = 128           # conv2 out channels
QCOLS = 30         # 3 taps x (9 conv1-patch cols + 1 bias/validity indicator)
KCOLS = 3 * C1     # 192: conv2 contraction size


def _round_up(x, m):
    return ((x + m - 1) // m) * m


def _conv_out_len(l, k=3, s=2, p=1):
    return (l + 2 * p - k) // s + 1


def _tiles(l2):
    """Return (lc, L2p, tl): heads position-chunk, padded L2, conv row tile."""
    lc = min(128, _round_up(l2, 16))                  # heads chunk (positions)
    l2p = _round_up(l2, lc)                           # per-batch padded length
    # conv row tile: largest divisor of L2p that is a multiple of 16 and <=1024
    tl = max(d for d in range(16, min(1024, l2p) + 1, 16) if l2p % d == 0)
    return lc, l2p, tl


# ---------------------------------------------------------------------------
# Kernels
# ---------------------------------------------------------------------------
def _conv_kernel(q_ref, w1_ref, w2_ref, b2_ref, y_ref, sum_ref, ssq_ref):
    # Fused conv1 -> LeakyReLU -> conv2 for one (batch, position-tile) cell,
    # plus per-tile BatchNorm partial sums (reduced in the wrapper).
    h = jnp.dot(q_ref[...], w1_ref[...], preferred_element_type=jnp.float32)
    h = jnp.where(h > 0, h, NEG_SLOPE * h)                       # (tl, 192)
    y = jnp.dot(h.astype(jnp.bfloat16), w2_ref[...],
                preferred_element_type=jnp.float32) + b2_ref[...]  # (tl, 128)
    y_ref[...] = y.astype(y_ref.dtype)
    # Padded rows evaluate to exactly b2 (zero q rows); corrected in wrapper.
    sum_ref[0] = jnp.sum(y, axis=0, keepdims=True)
    ssq_ref[0] = jnp.sum(y * y, axis=0, keepdims=True)


def _heads_kernel(feat_ref, w_ref, sc_ref, sh_ref, bh_ref,
                  rf_ref, cat_ref, cont_ref, acc_ref, *, n_cat, n_cont):
    # Fused: folded-BN affine + LeakyReLU on a feature chunk, then one
    # accumulated matmul against the lane-dense (n_heads, fc) head weights.
    j = pl.program_id(0)

    @pl.when(j == 0)
    def _():
        acc_ref[...] = jnp.zeros_like(acc_ref)

    f = feat_ref[...] * sc_ref[...] + sh_ref[...]        # bf16 * f32 -> f32
    f = jnp.where(f > 0, f, NEG_SLOPE * f)
    acc_ref[...] += lax.dot_general(
        f.astype(jnp.bfloat16), w_ref[...],
        dimension_numbers=(((1,), (1,)), ((), ())),      # feat @ w.T (lane dense)
        preferred_element_type=jnp.float32)

    @pl.when(j == pl.num_programs(0) - 1)
    def _():
        logits = acc_ref[...] + bh_ref[...]
        # real/fake: exact, numerically stable sigmoid
        z = logits[:, 0:1]
        r = 1.0 / (1.0 + jnp.exp(-jnp.abs(z)))
        rf_ref[...] = jnp.where(z >= 0, r, 1.0 - r)
        # category: softmax(dim=1), exact
        cl = logits[:, 1:1 + n_cat]
        e = jnp.exp(cl - jnp.max(cl, axis=1, keepdims=True))
        cat_ref[...] = e / jnp.sum(e, axis=1, keepdims=True)
        # continuous: linear
        cont_ref[...] = logits[:, 1 + n_cat:1 + n_cat + n_cont]


# ---------------------------------------------------------------------------
# Wrapper-side patch construction (cheap: 30 columns, channels-last)
# ---------------------------------------------------------------------------
def _conv_patches(x, L1, L2, L2p):
    # x: (B, L0, 3).  q[b, l, k*10 + (j*3+c)] = x-patch feeding h1p[2l+k],
    # q[b, l, k*10 + 9] = 1 if that tap is a valid (non-pad) conv1 position.
    B, _, _ = x.shape
    xp = jnp.pad(x, ((0, 0), (1, 1), (0, 0)))
    p1 = jnp.stack([xp[:, j:j + 2 * L1 - 1:2, :] for j in range(3)], axis=2)
    p1 = p1.reshape(B, L1, 9)
    pe = jnp.concatenate([p1, jnp.ones((B, L1, 1), p1.dtype)], axis=2)
    pe = jnp.pad(pe, ((0, 0), (1, 2 * L2 - L1), (0, 0)))   # h1p coords, 2*L2+1
    q = jnp.stack([pe[:, k:k + 2 * L2 - 1:2, :] for k in range(3)], axis=2)
    q = q.reshape(B, L2, QCOLS)
    q = jnp.pad(q, ((0, 0), (0, L2p - L2), (0, 0)))
    return q.reshape(B * L2p, QCOLS).astype(jnp.bfloat16)


# ---------------------------------------------------------------------------
# One-time weight packing into kernel-friendly layouts
# ---------------------------------------------------------------------------
def pack_params(params, seq_len):
    L1 = _conv_out_len(seq_len)
    L2 = _conv_out_len(L1)
    _, L2p, _ = _tiles(L2)
    F = C2 * L2
    Fp = C2 * L2p
    n_cat = params["w_cat"].shape[1]
    n_cont = params["w_cont"].shape[1]

    # conv1 block-diagonal (30, 192): rows k*10 + (j*3+c) hold w1, row k*10+9
    # holds b1 (multiplied by the validity indicator column so the conv's
    # "same" zero-padding positions stay exactly zero).
    w1m = jnp.transpose(params["w1"], (2, 1, 0)).reshape(9, C1)
    blk = jnp.concatenate([w1m, params["b1"].reshape(1, C1)], axis=0)  # (10,64)
    w1bd = jnp.zeros((QCOLS, KCOLS), jnp.float32)
    for k in range(3):
        w1bd = w1bd.at[k * 10:(k + 1) * 10, k * C1:(k + 1) * C1].set(blk)
    w1bd = w1bd.astype(jnp.bfloat16)

    # conv2 (128, 64, 3) -> (192, 128): row = k*64 + cin
    w2m = jnp.transpose(params["w2"], (2, 1, 0)).reshape(KCOLS, C2)
    w2m = w2m.astype(jnp.bfloat16)
    b2 = params["b2"].reshape(1, C2).astype(jnp.float32)

    # heads: concat (rf | cat | cont), reorder rows from the PyTorch flatten
    # order (channel-major c*L2+l) to position-major (l*128+c), zero-pad the
    # padded positions, then TRANSPOSE so the streamed weight is lane-dense.
    w_h = jnp.concatenate(
        [params["w_rf"], params["w_cat"], params["w_cont"]], axis=1)   # (F, H)
    w_h = w_h.reshape(C2, L2, -1).transpose(1, 0, 2).reshape(F, -1)
    w_h = jnp.pad(w_h, ((0, Fp - F), (0, 0)))
    w_h = jnp.transpose(w_h).astype(jnp.bfloat16)                      # (H, Fp)
    b_h = jnp.concatenate([params["b_rf"], params["b_cat"], params["b_cont"]])
    b_h = b_h.reshape(1, -1).astype(jnp.float32)

    packed = dict(
        w1=w1bd, w2=w2m, b2=b2,
        gamma=params["gamma"].reshape(1, C2).astype(jnp.float32),
        beta=params["beta"].reshape(1, C2).astype(jnp.float32),
        w_heads=w_h, b_heads=b_h)
    return packed, n_cat, n_cont


# ---------------------------------------------------------------------------
# Forward
# ---------------------------------------------------------------------------
@functools.partial(jax.jit, static_argnames=("n_cat", "n_cont"))
def infogan_discriminator_forward(x, packed, n_cat, n_cont):
    B, L0, _ = x.shape
    L1 = _conv_out_len(L0)
    L2 = _conv_out_len(L1)
    lc, L2p, tl = _tiles(L2)
    NT = L2p // tl
    Fp = C2 * L2p
    fc = lc * C2
    n_heads = 1 + n_cat + n_cont

    # --- fused conv1 + LeakyReLU + conv2 (+ per-tile BN partial sums) -------
    q = _conv_patches(x, L1, L2, L2p)                       # (B*L2p, 30) bf16
    y, psum, pssq = pl.pallas_call(
        _conv_kernel,
        out_shape=(jax.ShapeDtypeStruct((B * L2p, C2), jnp.bfloat16),
                   jax.ShapeDtypeStruct((B * NT, 1, C2), jnp.float32),
                   jax.ShapeDtypeStruct((B * NT, 1, C2), jnp.float32)),
        grid=(B, NT),
        in_specs=[pl.BlockSpec((tl, QCOLS), lambda b, j: (b * NT + j, 0)),
                  pl.BlockSpec((QCOLS, KCOLS), lambda b, j: (0, 0)),
                  pl.BlockSpec((KCOLS, C2), lambda b, j: (0, 0)),
                  pl.BlockSpec((1, C2), lambda b, j: (0, 0))],
        out_specs=(pl.BlockSpec((tl, C2), lambda b, j: (b * NT + j, 0)),
                   pl.BlockSpec((1, 1, C2), lambda b, j: (b * NT + j, 0, 0)),
                   pl.BlockSpec((1, 1, C2), lambda b, j: (b * NT + j, 0, 0))),
        compiler_params=pltpu.CompilerParams(
            dimension_semantics=("parallel", "parallel")),
    )(q, packed["w1"], packed["w2"], packed["b2"])

    # --- fold training-mode BatchNorm (biased var) into scale / shift -------
    # Padded rows are exactly b2 (zero patches + zero bias indicator), so their
    # contribution to the partial sums is removed analytically.
    b2 = packed["b2"]
    n_valid = jnp.float32(B * L2)
    n_pad = jnp.float32(B * (L2p - L2))
    tot_s = jnp.sum(psum[:, 0, :], axis=0, keepdims=True) - n_pad * b2
    tot_q = jnp.sum(pssq[:, 0, :], axis=0, keepdims=True) - n_pad * (b2 * b2)
    mean = tot_s / n_valid
    var = jnp.maximum(tot_q / n_valid - mean * mean, 0.0)
    inv = lax.rsqrt(var + BN_EPS)
    scale = packed["gamma"] * inv
    shift = packed["beta"] - mean * scale
    scale_t = jnp.tile(scale, (1, lc))                      # (1, fc)
    shift_t = jnp.tile(shift, (1, lc))

    # --- fused BN-apply + LeakyReLU + 3 heads, tiled over features ----------
    feat = y.reshape(B, Fp)                                 # position-major
    heads = functools.partial(_heads_kernel, n_cat=n_cat, n_cont=n_cont)
    rf, cat, cont = pl.pallas_call(
        heads,
        out_shape=(jax.ShapeDtypeStruct((B, 1), jnp.float32),
                   jax.ShapeDtypeStruct((B, n_cat), jnp.float32),
                   jax.ShapeDtypeStruct((B, n_cont), jnp.float32)),
        grid=(Fp // fc,),
        in_specs=[pl.BlockSpec((B, fc), lambda j: (0, j)),
                  pl.BlockSpec((n_heads, fc), lambda j: (0, j)),
                  pl.BlockSpec((1, fc), lambda j: (0, 0)),
                  pl.BlockSpec((1, fc), lambda j: (0, 0)),
                  pl.BlockSpec((1, n_heads), lambda j: (0, 0))],
        out_specs=(pl.BlockSpec((B, 1), lambda j: (0, 0)),
                   pl.BlockSpec((B, n_cat), lambda j: (0, 0)),
                   pl.BlockSpec((B, n_cont), lambda j: (0, 0))),
        scratch_shapes=[pltpu.VMEM((B, n_heads), jnp.float32)],
        compiler_params=pltpu.CompilerParams(
            dimension_semantics=("arbitrary",)),
    )(feat, packed["w_heads"], scale_t, shift_t, packed["b_heads"])
    return rf, cat, cont


# ---------------------------------------------------------------------------
# Deterministic parameter init (shapes follow the PyTorch module __init__)
# ---------------------------------------------------------------------------
def init_params(key, num_categories, cont_dim, num_features):
    F = 32 * num_features
    ks = jax.random.split(key, 12)

    def rnd(k, shape, scale):
        return jax.random.normal(k, shape, jnp.float32) * scale

    return dict(
        w1=rnd(ks[0], (64, 3, 3), 0.10), b1=rnd(ks[1], (64,), 0.10),
        w2=rnd(ks[2], (128, 64, 3), 0.05), b2=rnd(ks[3], (128,), 0.05),
        gamma=1.0 + rnd(ks[4], (128,), 0.10), beta=rnd(ks[5], (128,), 0.10),
        w_rf=rnd(ks[6], (F, 1), 0.02), b_rf=rnd(ks[7], (1,), 0.02),
        w_cat=rnd(ks[8], (F, num_categories), 0.02),
        b_cat=rnd(ks[9], (num_categories,), 0.02),
        w_cont=rnd(ks[10], (F, cont_dim), 0.02),
        b_cont=rnd(ks[11], (cont_dim,), 0.02),
    )


# ---------------------------------------------------------------------------
# Pure-JAX reference (mirrors the PyTorch forward, f32 throughout)
# ---------------------------------------------------------------------------
def reference_forward(x, params):
    x_ncl = jnp.transpose(x, (0, 2, 1)).astype(jnp.float32)

    def conv1d(inp, w, b):
        out = lax.conv_general_dilated(inp, w, window_strides=(2,),
                                       padding=[(1, 1)],
                                       dimension_numbers=("NCH", "OIH", "NCH"))
        return out + b[None, :, None]

    def lrelu(v):
        return jnp.where(v > 0, v, NEG_SLOPE * v)

    h = lrelu(conv1d(x_ncl, params["w1"], params["b1"]))
    h = conv1d(h, params["w2"], params["b2"])
    mean = jnp.mean(h, axis=(0, 2), keepdims=True)
    var = jnp.mean(jnp.square(h - mean), axis=(0, 2), keepdims=True)
    h = (h - mean) * lax.rsqrt(var + BN_EPS)
    h = h * params["gamma"][None, :, None] + params["beta"][None, :, None]
    h = lrelu(h)
    feat = h.reshape(h.shape[0], -1)
    rf = jax.nn.sigmoid(feat @ params["w_rf"] + params["b_rf"])
    cat = jax.nn.softmax(feat @ params["w_cat"] + params["b_cat"], axis=1)
    cont = feat @ params["w_cont"] + params["b_cont"]
    return rf, cat, cont


if __name__ == "__main__":
    # Small shapes consistent with the module: flatten size 32*num_features
    # requires input length == num_features for this conv stack.
    batch = 2
    num_features = 32          # small stand-in for the default 26404
    num_categories = 4
    cont_dim = 5

    key = jax.random.PRNGKey(0)
    kx, kp = jax.random.split(key)
    x = jax.random.normal(kx, (batch, num_features, 3), jnp.float32)
    params = init_params(kp, num_categories, cont_dim, num_features)
    packed, n_cat, n_cont = pack_params(params, num_features)

    rf, cat, cont = infogan_discriminator_forward(x, packed, n_cat, n_cont)
    jax.block_until_ready((rf, cat, cont))

    rf_ref, cat_ref, cont_ref = reference_forward(x, params)
    assert rf.shape == (batch, 1)
    assert cat.shape == (batch, num_categories)
    assert cont.shape == (batch, cont_dim)
    # bf16 matmul operands / bf16 feature storage -> looser tolerances than f32
    assert jnp.allclose(rf, rf_ref, rtol=2e-2, atol=2e-2), \
        float(jnp.max(jnp.abs(rf - rf_ref)))
    assert jnp.allclose(cat, cat_ref, rtol=2e-2, atol=2e-2), \
        float(jnp.max(jnp.abs(cat - cat_ref)))
    assert jnp.allclose(cont, cont_ref, rtol=2e-2, atol=2e-2), \
        float(jnp.max(jnp.abs(cont - cont_ref)))

    print("KERNEL_OK")
</pallas_src>

<mosaic_0001>
module attributes {stable_mosaic.version = 11 : i64} {
  func.func @_conv_kernel(%arg0: i32, %arg1: i32, %arg2: memref<16x30xbf16, #tpu.memory_space<vmem>>, %arg3: memref<30x192xbf16, #tpu.memory_space<vmem>>, %arg4: memref<192x128xbf16, #tpu.memory_space<vmem>>, %arg5: memref<1x128xf32, #tpu.memory_space<vmem>>, %arg6: memref<16x128xbf16, #tpu.memory_space<vmem>>, %arg7: memref<1x1x128xf32, #tpu.memory_space<vmem>>, %arg8: memref<1x1x128xf32, #tpu.memory_space<vmem>>) attributes {dimension_semantics = [#tpu.dimension_semantics<parallel>, #tpu.dimension_semantics<parallel>], iteration_bounds = array<i64: 2, 1>, scalar_prefetch = 0 : i64, scratch_operands = 0 : i64, tpu.core_type = #tpu.core_type<tc>, window_params = [{transform_indices = @transform_0, window_bounds = array<i64: 16, 30>}, {pipeline_mode = #tpu.pipeline_mode<synchronous>, transform_indices = @transform_1, window_bounds = array<i64: 30, 192>}, {pipeline_mode = #tpu.pipeline_mode<synchronous>, transform_indices = @transform_2, window_bounds = array<i64: 192, 128>}, {pipeline_mode = #tpu.pipeline_mode<synchronous>, transform_indices = @transform_3, window_bounds = array<i64: 1, 128>}, {transform_indices = @transform_4, window_bounds = array<i64: 16, 128>}, {transform_indices = @transform_5, window_bounds = array<i64: 1, 1, 128>}, {transform_indices = @transform_6, window_bounds = array<i64: 1, 1, 128>}]} {
    %c0 = arith.constant 0 : index
    %c0_0 = arith.constant 0 : index
    %0 = vector.load %arg2[%c0, %c0_0] : memref<16x30xbf16, #tpu.memory_space<vmem>>, vector<16x30xbf16>
    %c0_1 = arith.constant 0 : index
    %c0_2 = arith.constant 0 : index
    %1 = vector.load %arg3[%c0_1, %c0_2] : memref<30x192xbf16, #tpu.memory_space<vmem>>, vector<30x192xbf16>
    %cst = arith.constant dense<0.000000e+00> : vector<16x192xf32>
    %2 = tpu.matmul %0, %1, %cst {dimension_numbers = #tpu.dot_dimension_numbers<[1], [0], [0], [1], [0, 0, 1, 1], [], []>} : vector<16x30xbf16>, vector<30x192xbf16>, vector<16x192xf32> -> vector<16x192xf32>
    %cst_3 = arith.constant 0.000000e+00 : f32
    %3 = vector.broadcast %cst_3 : f32 to vector<16x192xf32>
    %4 = arith.cmpf ogt, %2, %3 : vector<16x192xf32>
    %cst_4 = arith.constant 2.000000e-01 : f32
    %5 = vector.broadcast %cst_4 : f32 to vector<16x192xf32>
    %6 = arith.mulf %5, %2 : vector<16x192xf32>
    %7 = arith.select %4, %2, %6 : vector<16x192xi1>, vector<16x192xf32>
    %8 = arith.truncf %7 : vector<16x192xf32> to vector<16x192xbf16>
    %c0_5 = arith.constant 0 : index
    %c0_6 = arith.constant 0 : index
    %9 = vector.load %arg4[%c0_5, %c0_6] : memref<192x128xbf16, #tpu.memory_space<vmem>>, vector<192x128xbf16>
    %cst_7 = arith.constant dense<0.000000e+00> : vector<16x128xf32>
    %10 = tpu.matmul %8, %9, %cst_7 {dimension_numbers = #tpu.dot_dimension_numbers<[1], [0], [0], [1], [0, 0, 1, 1], [], []>} : vector<16x192xbf16>, vector<192x128xbf16>, vector<16x128xf32> -> vector<16x128xf32>
    %c0_8 = arith.constant 0 : index
    %c0_9 = arith.constant 0 : index
    %11 = vector.load %arg5[%c0_8, %c0_9] : memref<1x128xf32, #tpu.memory_space<vmem>>, vector<1x128xf32>
    %12 = vector.broadcast %11 : vector<1x128xf32> to vector<16x128xf32>
    %13 = arith.addf %10, %12 : vector<16x128xf32>
    %14 = arith.truncf %13 : vector<16x128xf32> to vector<16x128xbf16>
    %c0_10 = arith.constant 0 : index
    %c0_11 = arith.constant 0 : index
    %15 = vector.load %arg6[%c0_10, %c0_11] : memref<16x128xbf16, #tpu.memory_space<vmem>>, vector<16x128xbf16>
    tpu.vector_store %arg6[%c0_10, %c0_11], %14 {strides = array<i32>} : memref<16x128xbf16, #tpu.memory_space<vmem>>, vector<16x128xbf16>,
    %cst_12 = arith.constant dense<0.000000e+00> : vector<128xf32>
    %16 = vector.multi_reduction <add>, %13, %cst_12 [0] : vector<16x128xf32> to vector<128xf32>
    %17 = vector.shape_cast %16 : vector<128xf32> to vector<1x128xf32>
    %c0_13 = arith.constant 0 : index
    %c0_14 = arith.constant 0 : index
    %c0_15 = arith.constant 0 : index
    %18 = vector.load %arg7[%c0_13, %c0_14, %c0_15] : memref<1x1x128xf32, #tpu.memory_space<vmem>>, vector<1x1x128xf32>
    %19 = vector.shape_cast %18 : vector<1x1x128xf32> to vector<1x128xf32>
    %20 = vector.shape_cast %17 : vector<1x128xf32> to vector<1x1x128xf32>
    tpu.vector_store %arg7[%c0_13, %c0_14, %c0_15], %20 {strides = array<i32>} : memref<1x1x128xf32, #tpu.memory_space<vmem>>, vector<1x1x128xf32>,
    %21 = arith.mulf %13, %13 : vector<16x128xf32>
    %cst_16 = arith.constant dense<0.000000e+00> : vector<128xf32>
    %22 = vector.multi_reduction <add>, %21, %cst_16 [0] : vector<16x128xf32> to vector<128xf32>
    %23 = vector.shape_cast %22 : vector<128xf32> to vector<1x128xf32>
    %c0_17 = arith.constant 0 : index
    %c0_18 = arith.constant 0 : index
    %c0_19 = arith.constant 0 : index
    %24 = vector.load %arg8[%c0_17, %c0_18, %c0_19] : memref<1x1x128xf32, #tpu.memory_space<vmem>>, vector<1x1x128xf32>
    %25 = vector.shape_cast %24 : vector<1x1x128xf32> to vector<1x128xf32>
    %26 = vector.shape_cast %23 : vector<1x128xf32> to vector<1x1x128xf32>
    tpu.vector_store %arg8[%c0_17, %c0_18, %c0_19], %26 {strides = array<i32>} : memref<1x1x128xf32, #tpu.memory_space<vmem>>, vector<1x1x128xf32>,
    return
  }
  func.func @transform_0(%arg0: i32, %arg1: i32) -> (i32, i32) {
    %c1_i32 = arith.constant 1 : i32
    %0 = arith.muli %arg0, %c1_i32 : i32
    %1 = arith.addi %0, %arg1 : i32
    %c0_i32 = arith.constant 0 : i32
    %c0_i32_0 = arith.constant 0 : i32
    return %1, %c0_i32 : i32, i32
  }
  func.func @transform_1(%arg0: i32, %arg1: i32) -> (i32, i32) {
    %c0_i32 = arith.constant 0 : i32
    %c0_i32_0 = arith.constant 0 : i32
    %c0_i32_1 = arith.constant 0 : i32
    return %c0_i32, %c0_i32_0 : i32, i32
  }
  func.func @transform_2(%arg0: i32, %arg1: i32) -> (i32, i32) {
    %c0_i32 = arith.constant 0 : i32
    %c0_i32_0 = arith.constant 0 : i32
    %c0_i32_1 = arith.constant 0 : i32
    return %c0_i32, %c0_i32_0 : i32, i32
  }
  func.func @transform_3(%arg0: i32, %arg1: i32) -> (i32, i32) {
    %c0_i32 = arith.constant 0 : i32
    %c0_i32_0 = arith.constant 0 : i32
    %c0_i32_1 = arith.constant 0 : i32
    return %c0_i32, %c0_i32_0 : i32, i32
  }
  func.func @transform_4(%arg0: i32, %arg1: i32) -> (i32, i32) {
    %c1_i32 = arith.constant 1 : i32
    %0 = arith.muli %arg0, %c1_i32 : i32
    %1 = arith.addi %0, %arg1 : i32
    %c0_i32 = arith.constant 0 : i32
    %c0_i32_0 = arith.constant 0 : i32
    return %1, %c0_i32 : i32, i32
  }
  func.func @transform_5(%arg0: i32, %arg1: i32) -> (i32, i32, i32) {
    %c1_i32 = arith.constant 1 : i32
    %0 = arith.muli %arg0, %c1_i32 : i32
    %1 = arith.addi %0, %arg1 : i32
    %c0_i32 = arith.constant 0 : i32
    %c0_i32_0 = arith.constant 0 : i32
    %c0_i32_1 = arith.constant 0 : i32
    return %1, %c0_i32, %c0_i32_0 : i32, i32, i32
  }
  func.func @transform_6(%arg0: i32, %arg1: i32) -> (i32, i32, i32) {
    %c1_i32 = arith.constant 1 : i32
    %0 = arith.muli %arg0, %c1_i32 : i32
    %1 = arith.addi %0, %arg1 : i32
    %c0_i32 = arith.constant 0 : i32
    %c0_i32_0 = arith.constant 0 : i32
    %c0_i32_1 = arith.constant 0 : i32
    return %1, %c0_i32, %c0_i32_0 : i32, i32, i32
  }
}

module attributes {stable_mosaic.version = 11 : i64} {
  func.func @_heads_kernel(%arg0: i32, %arg1: memref<2x2048xbf16, #tpu.memory_space<vmem>>, %arg2: memref<10x2048xbf16, #tpu.memory_space<vmem>>, %arg3: memref<1x2048xf32, #tpu.memory_space<vmem>>, %arg4: memref<1x2048xf32, #tpu.memory_space<vmem>>, %arg5: memref<1x10xf32, #tpu.memory_space<vmem>>, %arg6: memref<2x1xf32, #tpu.memory_space<vmem>>, %arg7: memref<2x4xf32, #tpu.memory_space<vmem>>, %arg8: memref<2x5xf32, #tpu.memory_space<vmem>>, %arg9: memref<2x10xf32, #tpu.memory_space<vmem>>) attributes {dimension_semantics = [#tpu.dimension_semantics<arbitrary>], iteration_bounds = array<i64: 1>, scalar_prefetch = 0 : i64, scratch_operands = 1 : i64, tpu.core_type = #tpu.core_type<tc>, window_params = [{transform_indices = @transform_0, window_bounds = array<i64: 2, 2048>}, {transform_indices = @transform_1, window_bounds = array<i64: 10, 2048>}, {pipeline_mode = #tpu.pipeline_mode<synchronous>, transform_indices = @transform_2, window_bounds = array<i64: 1, 2048>}, {pipeline_mode = #tpu.pipeline_mode<synchronous>, transform_indices = @transform_3, window_bounds = array<i64: 1, 2048>}, {pipeline_mode = #tpu.pipeline_mode<synchronous>, transform_indices = @transform_4, window_bounds = array<i64: 1, 10>}, {pipeline_mode = #tpu.pipeline_mode<synchronous>, transform_indices = @transform_5, window_bounds = array<i64: 2, 1>}, {pipeline_mode = #tpu.pipeline_mode<synchronous>, transform_indices = @transform_6, window_bounds = array<i64: 2, 4>}, {pipeline_mode = #tpu.pipeline_mode<synchronous>, transform_indices = @transform_7, window_bounds = array<i64: 2, 5>}]} {
    %c0_i32 = arith.constant 0 : i32
    %0 = arith.cmpi eq, %arg0, %c0_i32 : i32
    %1 = arith.extui %0 : i1 to i32
    %c0_i32_0 = arith.constant 0 : i32
    %2 = arith.cmpi ne, %1, %c0_i32_0 : i32
    scf.if %2 {
      %cst_16 = arith.constant 0.000000e+00 : f32
      %25 = vector.broadcast %cst_16 : f32 to vector<2x10xf32>
      %c0_17 = arith.constant 0 : index
      %c0_18 = arith.constant 0 : index
      %26 = vector.load %arg9[%c0_17, %c0_18] : memref<2x10xf32, #tpu.memory_space<vmem>>, vector<2x10xf32>
      tpu.vector_store %arg9[%c0_17, %c0_18], %25 {strides = array<i32>} : memref<2x10xf32, #tpu.memory_space<vmem>>, vector<2x10xf32>,
    } else {
    }
    %c0 = arith.constant 0 : index
    %c0_1 = arith.constant 0 : index
    %3 = vector.load %arg1[%c0, %c0_1] : memref<2x2048xbf16, #tpu.memory_space<vmem>>, vector<2x2048xbf16>
    %c0_2 = arith.constant 0 : index
    %c0_3 = arith.constant 0 : index
    %4 = vector.load %arg3[%c0_2, %c0_3] : memref<1x2048xf32, #tpu.memory_space<vmem>>, vector<1x2048xf32>
    %5 = arith.extf %3 : vector<2x2048xbf16> to vector<2x2048xf32>
    %6 = vector.broadcast %4 : vector<1x2048xf32> to vector<2x2048xf32>
    %7 = arith.mulf %5, %6 : vector<2x2048xf32>
    %c0_4 = arith.constant 0 : index
    %c0_5 = arith.constant 0 : index
    %8 = vector.load %arg4[%c0_4, %c0_5] : memref<1x2048xf32, #tpu.memory_space<vmem>>, vector<1x2048xf32>
    %9 = vector.broadcast %8 : vector<1x2048xf32> to vector<2x2048xf32>
    %10 = arith.addf %7, %9 : vector<2x2048xf32>
    %cst = arith.constant 0.000000e+00 : f32
    %11 = vector.broadcast %cst : f32 to vector<2x2048xf32>
    %12 = arith.cmpf ogt, %10, %11 : vector<2x2048xf32>
    %cst_6 = arith.constant 2.000000e-01 : f32
    %13 = vector.broadcast %cst_6 : f32 to vector<2x2048xf32>
    %14 = arith.mulf %13, %10 : vector<2x2048xf32>
    %15 = arith.select %12, %10, %14 : vector<2x2048xi1>, vector<2x2048xf32>
    %c0_7 = arith.constant 0 : index
    %c0_8 = arith.constant 0 : index
    %16 = vector.load %arg9[%c0_7, %c0_8] : memref<2x10xf32, #tpu.memory_space<vmem>>, vector<2x10xf32>
    %17 = arith.truncf %15 : vector<2x2048xf32> to vector<2x2048xbf16>
    %c0_9 = arith.constant 0 : index
    %c0_10 = arith.constant 0 : index
    %18 = vector.load %arg2[%c0_9, %c0_10] : memref<10x2048xbf16, #tpu.memory_space<vmem>>, vector<10x2048xbf16>
    %cst_11 = arith.constant dense<0.000000e+00> : vector<2x10xf32>
    %19 = tpu.matmul %17, %18, %cst_11 {dimension_numbers = #tpu.dot_dimension_numbers<[1], [1], [0], [0], [0, 0, 1, 0], [], []>} : vector<2x2048xbf16>, vector<10x2048xbf16>, vector<2x10xf32> -> vector<2x10xf32>
    %20 = arith.addf %16, %19 : vector<2x10xf32>
    %c0_12 = arith.constant 0 : index
    %c0_13 = arith.constant 0 : index
    %21 = vector.load %arg9[%c0_12, %c0_13] : memref<2x10xf32, #tpu.memory_space<vmem>>, vector<2x10xf32>
    tpu.vector_store %arg9[%c0_12, %c0_13], %20 {strides = array<i32>} : memref<2x10xf32, #tpu.memory_space<vmem>>, vector<2x10xf32>,
    %c0_i32_14 = arith.constant 0 : i32
    %22 = arith.cmpi eq, %arg0, %c0_i32_14 : i32
    %23 = arith.extui %22 : i1 to i32
    %c0_i32_15 = arith.constant 0 : i32
    %24 = arith.cmpi ne, %23, %c0_i32_15 : i32
    scf.if %24 {
      %c0_16 = arith.constant 0 : index
      %c0_17 = arith.constant 0 : index
      %25 = vector.load %arg9[%c0_16, %c0_17] : memref<2x10xf32, #tpu.memory_space<vmem>>, vector<2x10xf32>
      %c0_18 = arith.constant 0 : index
      %c0_19 = arith.constant 0 : index
      %26 = vector.load %arg5[%c0_18, %c0_19] : memref<1x10xf32, #tpu.memory_space<vmem>>, vector<1x10xf32>
      %27 = vector.broadcast %26 : vector<1x10xf32> to vector<2x10xf32>
      %28 = arith.addf %25, %27 : vector<2x10xf32>
      %29 = vector.extract_strided_slice %28 {offsets = [0, 0], sizes = [2, 1], strides = [1, 1]} : vector<2x10xf32> to vector<2x1xf32>
      %30 = math.absf %29 : vector<2x1xf32>
      %cst_20 = arith.constant 0.000000e+00 : f32
      %31 = vector.broadcast %cst_20 : f32 to vector<2x1xf32>
      %32 = arith.subf %31, %30 : vector<2x1xf32>
      %33 = math.exp %32 : vector<2x1xf32>
      %cst_21 = arith.constant 1.000000e+00 : f32
      %34 = vector.broadcast %cst_21 : f32 to vector<2x1xf32>
      %35 = arith.addf %34, %33 : vector<2x1xf32>
      %cst_22 = arith.constant 1.000000e+00 : f32
      %36 = vector.broadcast %cst_22 : f32 to vector<2x1xf32>
      %37 = arith.divf %36, %35 : vector<2x1xf32>
      %cst_23 = arith.constant 0.000000e+00 : f32
      %38 = vector.broadcast %cst_23 : f32 to vector<2x1xf32>
      %39 = arith.cmpf oge, %29, %38 : vector<2x1xf32>
      %cst_24 = arith.constant 1.000000e+00 : f32
      %40 = vector.broadcast %cst_24 : f32 to vector<2x1xf32>
      %41 = arith.subf %40, %37 : vector<2x1xf32>
      %42 = arith.select %39, %37, %41 : vector<2x1xi1>, vector<2x1xf32>
      %c0_25 = arith.constant 0 : index
      %c0_26 = arith.constant 0 : index
      %43 = vector.load %arg6[%c0_25, %c0_26] : memref<2x1xf32, #tpu.memory_space<vmem>>, vector<2x1xf32>
      tpu.vector_store %arg6[%c0_25, %c0_26], %42 {strides = array<i32>} : memref<2x1xf32, #tpu.memory_space<vmem>>, vector<2x1xf32>,
      %44 = vector.extract_strided_slice %28 {offsets = [0, 1], sizes = [2, 4], strides = [1, 1]} : vector<2x10xf32> to vector<2x4xf32>
      %cst_27 = arith.constant dense<0xFF800000> : vector<2xf32>
      %45 = vector.multi_reduction <maximumf>, %44, %cst_27 [1] : vector<2x4xf32> to vector<2xf32>
      %46 = vector.shape_cast %45 : vector<2xf32> to vector<2x1xf32>
      %47 = vector.broadcast %46 : vector<2x1xf32> to vector<2x4xf32>
      %48 = arith.subf %44, %47 : vector<2x4xf32>
      %49 = math.exp %48 : vector<2x4xf32>
      %cst_28 = arith.constant dense<0.000000e+00> : vector<2xf32>
      %50 = vector.multi_reduction <add>, %49, %cst_28 [1] : vector<2x4xf32> to vector<2xf32>
      %51 = vector.shape_cast %50 : vector<2xf32> to vector<2x1xf32>
      %52 = vector.broadcast %51 : vector<2x1xf32> to vector<2x4xf32>
      %53 = arith.divf %49, %52 : vector<2x4xf32>
      %c0_29 = arith.constant 0 : index
      %c0_30 = arith.constant 0 : index
      %54 = vector.load %arg7[%c0_29, %c0_30] : memref<2x4xf32, #tpu.memory_space<vmem>>, vector<2x4xf32>
      tpu.vector_store %arg7[%c0_29, %c0_30], %53 {strides = array<i32>} : memref<2x4xf32, #tpu.memory_space<vmem>>, vector<2x4xf32>,
      %55 = vector.extract_strided_slice %28 {offsets = [0, 5], sizes = [2, 5], strides = [1, 1]} : vector<2x10xf32> to vector<2x5xf32>
      %c0_31 = arith.constant 0 : index
      %c0_32 = arith.constant 0 : index
      %56 = vector.load %arg8[%c0_31, %c0_32] : memref<2x5xf32, #tpu.memory_space<vmem>>, vector<2x5xf32>
      tpu.vector_store %arg8[%c0_31, %c0_32], %55 {strides = array<i32>} : memref<2x5xf32, #tpu.memory_space<vmem>>, vector<2x5xf32>,
    } else {
    }
    return
  }
  func.func @transform_0(%arg0: i32) -> (i32, i32) {
    %c0_i32 = arith.constant 0 : i32
    %c0_i32_0 = arith.constant 0 : i32
    return %c0_i32, %arg0 : i32, i32
  }
  func.func @transform_1(%arg0: i32) -> (i32, i32) {
    %c0_i32 = arith.constant 0 : i32
    %c0_i32_0 = arith.constant 0 : i32
    return %c0_i32, %arg0 : i32, i32
  }
  func.func @transform_2(%arg0: i32) -> (i32, i32) {
    %c0_i32 = arith.constant 0 : i32
    %c0_i32_0 = arith.constant 0 : i32
    %c0_i32_1 = arith.constant 0 : i32
    return %c0_i32, %c0_i32_0 : i32, i32
  }
  func.func @transform_3(%arg0: i32) -> (i32, i32) {
    %c0_i32 = arith.constant 0 : i32
    %c0_i32_0 = arith.constant 0 : i32
    %c0_i32_1 = arith.constant 0 : i32
    return %c0_i32, %c0_i32_0 : i32, i32
  }
  func.func @transform_4(%arg0: i32) -> (i32, i32) {
    %c0_i32 = arith.constant 0 : i32
    %c0_i32_0 = arith.constant 0 : i32
    %c0_i32_1 = arith.constant 0 : i32
    return %c0_i32, %c0_i32_0 : i32, i32
  }
  func.func @transform_5(%arg0: i32) -> (i32, i32) {
    %c0_i32 = arith.constant 0 : i32
    %c0_i32_0 = arith.constant 0 : i32
    %c0_i32_1 = arith.constant 0 : i32
    return %c0_i32, %c0_i32_0 : i32, i32
  }
  func.func @transform_6(%arg0: i32) -> (i32, i32) {
    %c0_i32 = arith.constant 0 : i32
    %c0_i32_0 = arith.constant 0 : i32
    %c0_i32_1 = arith.constant 0 : i32
    return %c0_i32, %c0_i32_0 : i32, i32
  }
  func.func @transform_7(%arg0: i32) -> (i32, i32) {
    %c0_i32 = arith.constant 0 : i32
    %c0_i32_0 = arith.constant 0 : i32
    %c0_i32_1 = arith.constant 0 : i32
    return %c0_i32, %c0_i32_0 : i32, i32
  }
}

</mosaic_0001>

<llo_original>
// kernel: infogan_discriminator_forward.2
$region0: #{infogan_discriminator_forward.2}
  #allocation0 [shape = 'u32[]', space=smem, size = 0x4, offset = 0x4, fixed_abs, tag = 'smem constant byte address 0x4 - core index']
  #allocation1 [shape = 'u32[72,128]{1,0:T(1,128)}', space=vmem, size = 0x9000, scoped, tag = 'internal scratch']
  %s0 = inlined_call_operand.vmem [shape: bf16[32,30], index: 0, kind: input, shape index: {}]
  %s1 = inlined_call_operand.vmem [shape: bf16[30,192], index: 1, kind: input, shape index: {}]
  %s2 = inlined_call_operand.vmem [shape: bf16[192,128], index: 2, kind: input, shape index: {}]
  %s3 = inlined_call_operand.vmem [shape: f32[1,128], index: 3, kind: input, shape index: {}]
  %s4 = inlined_call_operand.vmem [shape: bf16[32,128], index: 4, kind: output, shape index: {0}]
  %s5 = inlined_call_operand.vmem [shape: f32[2,1,128], index: 5, kind: output, shape index: {1}]
  %s6 = inlined_call_operand.vmem [shape: f32[2,1,128], index: 6, kind: output, shape index: {2}]
  %7 = xla_tuple %s4, %s5, %s6
  %s8 = sld [smem:[#allocation0]]
  $region65: #{infogan_discriminator_forward.2} parent=0
    _
  %s10 = ssub.s32 1, %s8
  %s11 = scalar_select 0, %s10, %s8
  loop: start=0, step=1, limit=4
  $region2: #{infogan_discriminator_forward.2} parent=0 // loop_pre_header
    _
  $region3: #{infogan_discriminator_forward.2} parent=0 // loop_header
    %s13 = sphi 0, %s17
    %p14 = scmp.ge.s32.totalorder %s13, 4
    %s20 = sphi 0, %s32
    %s21 = sphi 0, %s28
    %s22 = sphi 0, %s20
    %s23 = sphi 0, %s21
    %s24 = sphi 0, %s22
    %s25 = sphi 0, %s23
    %s37 = sphi 0, %s39
    %s40 = sphi 0, %s37
    %s41 = sphi 0, %s40
    %s57 = sphi 0, %s41
    %s61 = sphi 0, %s61
    %s63 = sphi 0, %s61
    %s64 = sphi 0, %s63
    %s78 = sphi 0, %s64
    %s82 = sphi 0, %s82
    %s84 = sphi 0, %s82
    %s85 = sphi 0, %s84
    %s99 = sphi 0, %s85
    %s103 = sphi 0, %s103
    %s105 = sphi 0, %s103
    %s106 = sphi 0, %s105
    %s120 = sphi 0, %s106
    %s128 = sphi 0, %s130
    %s131 = sphi 0, %s128
    %s132 = sphi 0, %s131
    %s148 = sphi 0, %s132
    %s156 = sphi 0, %s158
    %s159 = sphi 0, %s156
    %s160 = sphi 0, %s159
    %s176 = sphi 0, %s160
    %s184 = sphi 0, %s186
    %s187 = sphi 0, %s184
    %s188 = sphi 0, %s187
    %s204 = sphi 0, %s188
  $region4: #{infogan_discriminator_forward.2} parent=0 // loop_header_branch
    %16 = sbr.rel (%p14) target = $region8
  $region5: #{infogan_discriminator_forward.2} parent=0 // loop_body
    %s18 = ssub.s32 %s13, 1
    %s19 = ssub.s32 %s13, 2
    %s26 = sadd.s32 1, %s21
    %p27 = scmp.ge.s32.totalorder %s26, 1
    %s28 = scalar_select %p27, 0, %s26
    %s29 = sadd.s32 1, %s20
    %s30 = scalar_select %p27, %s29, %s20
    %p31 = scmp.ge.s32.totalorder %s30, 2
    %s32 = scalar_select %p31, 0, %s30
    %s33 = sadd.s32 %s20, %s21
    %s34 = sadd.s32 %s32, %s28
    %s35 = ssub.s32 %s33, %s34
    %p36 = scmp.eq.s32.totalorder %s35, 0
    %s38 = sadd.s32 %s37, 1
    %s39 = scalar_select %p36, %s37, %s38
    %p42 = pneg %p36
    %p43 = scmp.eq.s32.totalorder %s13, 1
    %p44 = por %p42, %p43
    %p45 = scmp.ne.s32.totalorder %s37, %s40
    %p46 = scmp.eq.s32.totalorder %s13, 0
    %p47 = por %p45, %p46
    %p48 = scmp.ne.s32.totalorder %s37, %s40
    %p49 = scmp.eq.s32.totalorder %s18, 1
    %p50 = por %p48, %p49
    %p51 = scmp.ne.s32.totalorder %s40, %s41
    %p52 = scmp.eq.s32.totalorder %s18, 0
    %p53 = por %p51, %p52
    %p54 = scmp.ne.s32.totalorder %s40, %s41
    %p55 = scmp.eq.s32.totalorder %s19, 1
    %p56 = por %p54, %p55
    %p58 = scmp.ne.s32.totalorder %s41, %s57
    %p59 = scmp.eq.s32.totalorder %s19, 0
    %p60 = por %p58, %p59
    %s62 = sadd.s32 %s61, 1
    %p65 = scmp.eq.s32.totalorder %s13, 1
    %p66 = scmp.ne.s32.totalorder %s61, %s63
    %p67 = scmp.eq.s32.totalorder %s13, 0
    %p68 = por %p66, %p67
    %p69 = scmp.ne.s32.totalorder %s61, %s63
    %p70 = scmp.eq.s32.totalorder %s18, 1
    %p71 = por %p69, %p70
    %p72 = scmp.ne.s32.totalorder %s63, %s64
    %p73 = scmp.eq.s32.totalorder %s18, 0
    %p74 = por %p72, %p73
    %p75 = scmp.ne.s32.totalorder %s63, %s64
    %p76 = scmp.eq.s32.totalorder %s19, 1
    %p77 = por %p75, %p76
    %p79 = scmp.ne.s32.totalorder %s64, %s78
    %p80 = scmp.eq.s32.totalorder %s19, 0
    %p81 = por %p79, %p80
    %s83 = sadd.s32 %s82, 1
    %p86 = scmp.eq.s32.totalorder %s13, 1
    %p87 = scmp.ne.s32.totalorder %s82, %s84
    %p88 = scmp.eq.s32.totalorder %s13, 0
    %p89 = por %p87, %p88
    %p90 = scmp.ne.s32.totalorder %s82, %s84
    %p91 = scmp.eq.s32.totalorder %s18, 1
    %p92 = por %p90, %p91
    %p93 = scmp.ne.s32.totalorder %s84, %s85
    %p94 = scmp.eq.s32.totalorder %s18, 0
    %p95 = por %p93, %p94
    %p96 = scmp.ne.s32.totalorder %s84, %s85
    %p97 = scmp.eq.s32.totalorder %s19, 1
    %p98 = por %p96, %p97
    %p100 = scmp.ne.s32.totalorder %s85, %s99
    %p101 = scmp.eq.s32.totalorder %s19, 0
    %p102 = por %p100, %p101
    %s104 = sadd.s32 %s103, 1
    %p107 = scmp.eq.s32.totalorder %s13, 1
    %p108 = scmp.ne.s32.totalorder %s103, %s105
    %p109 = scmp.eq.s32.totalorder %s13, 0
    %p110 = por %p108, %p109
    %p111 = scmp.ne.s32.totalorder %s103, %s105
    %p112 = scmp.eq.s32.totalorder %s18, 1
    %p113 = por %p111, %p112
    %p114 = scmp.ne.s32.totalorder %s105, %s106
    %p115 = scmp.eq.s32.totalorder %s18, 0
    %p116 = por %p114, %p115
    %p117 = scmp.ne.s32.totalorder %s105, %s106
    %p118 = scmp.eq.s32.totalorder %s19, 1
    %p119 = por %p117, %p118
    %p121 = scmp.ne.s32.totalorder %s106, %s120
    %p122 = scmp.eq.s32.totalorder %s19, 0
    %p123 = por %p121, %p122
    %s124 = sadd.s32 %s20, %s21
    %s125 = sadd.s32 %s32, %s28
    %s126 = ssub.s32 %s124, %s125
    %p127 = scmp.eq.s32.totalorder %s126, 0
    %s129 = sadd.s32 %s128, 1
    %s130 = scalar_select %p127, %s128, %s129
    %p133 = pneg %p127
    %p134 = scmp.eq.s32.totalorder %s13, 1
    %p135 = por %p133, %p134
    %p136 = scmp.ne.s32.totalorder %s128, %s131
    %p137 = scmp.eq.s32.totalorder %s13, 0
    %p138 = por %p136, %p137
    %p139 = scmp.ne.s32.totalorder %s128, %s131
    %p140 = scmp.eq.s32.totalorder %s18, 1
    %p141 = por %p139, %p140
    %p142 = scmp.ne.s32.totalorder %s131, %s132
    %p143 = scmp.eq.s32.totalorder %s18, 0
    %p144 = por %p142, %p143
    %p145 = scmp.ne.s32.totalorder %s131, %s132
    %p146 = scmp.eq.s32.totalorder %s19, 1
    %p147 = por %p145, %p146
    %p149 = scmp.ne.s32.totalorder %s132, %s148
    %p150 = scmp.eq.s32.totalorder %s19, 0
    %p151 = por %p149, %p150
    %s152 = sadd.s32 %s20, %s21
    %s153 = sadd.s32 %s32, %s28
    %s154 = ssub.s32 %s152, %s153
    %p155 = scmp.eq.s32.totalorder %s154, 0
    %s157 = sadd.s32 %s156, 1
    %s158 = scalar_select %p155, %s156, %s157
    %p161 = pneg %p155
    %p162 = scmp.eq.s32.totalorder %s13, 1
    %p163 = por %p161, %p162
    %p164 = scmp.ne.s32.totalorder %s156, %s159
    %p165 = scmp.eq.s32.totalorder %s13, 0
    %p166 = por %p164, %p165
    %p167 = scmp.ne.s32.totalorder %s156, %s159
    %p168 = scmp.eq.s32.totalorder %s18, 1
    %p169 = por %p167, %p168
    %p170 = scmp.ne.s32.totalorder %s159, %s160
    %p171 = scmp.eq.s32.totalorder %s18, 0
    %p172 = por %p170, %p171
    %p173 = scmp.ne.s32.totalorder %s159, %s160
    %p174 = scmp.eq.s32.totalorder %s19, 1
    %p175 = por %p173, %p174
    %p177 = scmp.ne.s32.totalorder %s160, %s176
    %p178 = scmp.eq.s32.totalorder %s19, 0
    %p179 = por %p177, %p178
    %s180 = sadd.s32 %s20, %s21
    %s181 = sadd.s32 %s32, %s28
    %s182 = ssub.s32 %s180, %s181
    %p183 = scmp.eq.s32.totalorder %s182, 0
    %s185 = sadd.s32 %s184, 1
    %s186 = scalar_select %p183, %s184, %s185
    %p189 = pneg %p183
    %p190 = scmp.eq.s32.totalorder %s13, 1
    %p191 = por %p189, %p190
    %p192 = scmp.ne.s32.totalorder %s184, %s187
    %p193 = scmp.eq.s32.totalorder %s13, 0
    %p194 = por %p192, %p193
    %p195 = scmp.ne.s32.totalorder %s184, %s187
    %p196 = scmp.eq.s32.totalorder %s18, 1
    %p197 = por %p195, %p196
    %p198 = scmp.ne.s32.totalorder %s187, %s188
    %p199 = scmp.eq.s32.totalorder %s18, 0
    %p200 = por %p198, %p199
    %p201 = scmp.ne.s32.totalorder %s187, %s188
    %p202 = scmp.eq.s32.totalorder %s19, 1
    %p203 = por %p201, %p202
    %p205 = scmp.ne.s32.totalorder %s188, %s204
    %p206 = scmp.eq.s32.totalorder %s19, 0
    %p207 = por %p205, %p206
    %p208 = scmp.le.s32.totalorder 1, %s13
    %p209 = scmp.lt.s32.totalorder %s13, 3
    %p210 = pnand %p208, %p209
    %p211 = pneg %p210
    // Predicated region
    $region9: #{infogan_discriminator_forward.2} parent=5 // pred_check
      _
    $region10: #{infogan_discriminator_forward.2} parent=5 // pred_check_branch
      %213 = sbr.rel (%p210) target = $region12
    $region11: #{infogan_discriminator_forward.2} parent=5 // pred_region
      %s214 = ssub.s32 %s13, 1
      // Predicated region
      $region13: #{infogan_discriminator_forward.2} parent=11 // pred_check
        %p215 = pneg %p74
      $region14: #{infogan_discriminator_forward.2} parent=11 // pred_check_branch
        %217 = sbr.rel (%p215) target = $region16
      $region15: #{infogan_discriminator_forward.2} parent=11 // pred_region
        _
      $region16: #{infogan_discriminator_forward.2} parent=11 // pred_fallthru
        _
      // Predicated region
      $region17: #{infogan_discriminator_forward.2} parent=11 // pred_check
        %p218 = pneg %p95
      $region18: #{infogan_discriminator_forward.2} parent=11 // pred_check_branch
        %220 = sbr.rel (%p218) target = $region20
      $region19: #{infogan_discriminator_forward.2} parent=11 // pred_region
        _
      $region20: #{infogan_discriminator_forward.2} parent=11 // pred_fallthru
        _
      // Predicated region
      $region21: #{infogan_discriminator_forward.2} parent=11 // pred_check
        %p221 = pneg %p116
      $region22: #{infogan_discriminator_forward.2} parent=11 // pred_check_branch
        %223 = sbr.rel (%p221) target = $region24
      $region23: #{infogan_discriminator_forward.2} parent=11 // pred_region
        _
      $region24: #{infogan_discriminator_forward.2} parent=11 // pred_fallthru
        _
    $region12: #{infogan_discriminator_forward.2} parent=5 // pred_fallthru
      _
    %p224 = scmp.lt.s32.totalorder %s13, 2
    // Predicated region
    $region25: #{infogan_discriminator_forward.2} parent=5 // pred_check
      %p225 = pneg %p224
    $region26: #{infogan_discriminator_forward.2} parent=5 // pred_check_branch
      %227 = sbr.rel (%p225) target = $region28
    $region27: #{infogan_discriminator_forward.2} parent=5 // pred_region
      // Predicated region
      $region29: #{infogan_discriminator_forward.2} parent=27 // pred_check
        %p228 = pneg %p47
      $region30: #{infogan_discriminator_forward.2} parent=27 // pred_check_branch
        %230 = sbr.rel (%p228) target = $region32
      $region31: #{infogan_discriminator_forward.2} parent=27 // pred_region
        %s231 = sadd.s32 %s20, %s21
        %s232 = smul.u32 2, %s231
        %p233 = scmp.lt.s32.totalorder %s232, 3
        %s234 = scalar_select %p233, %s232, 3
        %s235 = smul.addr %s234, 4
        %s236 = scalar_lea.vmem %s0, %s235
        %s237 = sadd.s32 %s20, %s21
        %s238 = smul.u32 2, %s237
      $region32: #{infogan_discriminator_forward.2} parent=27 // pred_fallthru
        _
    $region28: #{infogan_discriminator_forward.2} parent=5 // pred_fallthru
      _
    %p239 = scmp.le.s32.totalorder 1, %s13
    %p240 = scmp.lt.s32.totalorder %s13, 3
    %p241 = pnand %p239, %p240
    %p242 = pneg %p241
    // Predicated region
    $region33: #{infogan_discriminator_forward.2} parent=5 // pred_check
      _
    $region34: #{infogan_discriminator_forward.2} parent=5 // pred_check_branch
      %244 = sbr.rel (%p241) target = $region36
    $region35: #{infogan_discriminator_forward.2} parent=5 // pred_region
      %s245 = ssub.s32 %s13, 1
      %s246 = sadd.s32 %s22, %s23
      %s247 = smul.u32 2, %s246
      %p248 = scmp.lt.s32.totalorder %s247, 3
      %s249 = scalar_select %p248, %s247, 3
      %s250 = smul.addr %s249, 4
      %s251 = scalar_lea.vmem %s0, %s250
      %p252 = pneg %p53
      %p253 = pneg %p50
      %p254 = pneg %p74
      %p255 = pneg %p71
      %p256 = pneg %p95
      %p257 = pneg %p92
      %p258 = pneg %p116
      %p259 = pneg %p113
      %p260 = pneg %p144
      %p261 = pneg %p141
      %s262 = sadd.s32 %s22, %s23
      %s263 = smul.u32 2, %s262
      %p264 = scmp.lt.s32.totalorder %s263, 3
      %s265 = scalar_select %p264, %s263, 3
      %s266 = smul.addr %s265, 4
      %s267 = scalar_lea.vmem %s4, %s266
      %p268 = pneg %p172
      %p269 = pneg %p169
      %s270 = sadd.s32 %s22, %s23
      %p271 = scmp.lt.s32.totalorder %s270, 1
      %s272 = scalar_select %p271, %s270, 1
      %s273 = scalar_lea.vmem %s5, %s272
      %p274 = pneg %p200
      %p275 = pneg %p197
      %s276 = sadd.s32 %s22, %s23
      %p277 = scmp.lt.s32.totalorder %s276, 1
      %s278 = scalar_select %p277, %s276, 1
      %s279 = scalar_lea.vmem %s6, %s278
      %s280 = sadd.s32 %s22, %s23
      %s281 = smul.u32 2, %s280
      %p282 = scmp.lt.s32.totalorder %s281, 3
      %s283 = scalar_select %p282, %s281, 3
      %s284 = smul.addr %s283, 4
      %s285 = scalar_lea.vmem %s0, %s284
      %s286 = sadd.s32 %s22, %s23
      %s287 = smul.u32 2, %s286
      %s288 = sadd.s32 %s22, %s23
      %s289 = smul.u32 2, %s288
      %p290 = scmp.lt.s32.totalorder %s289, 3
      %s291 = scalar_select %p290, %s289, 3
      %s292 = smul.addr %s291, 4
      %s293 = scalar_lea.vmem %s4, %s292
      %s294 = sadd.s32 %s22, %s23
      %s295 = smul.u32 2, %s294
      %s296 = sadd.s32 %s22, %s23
      %p297 = scmp.lt.s32.totalorder %s296, 1
      %s298 = scalar_select %p297, %s296, 1
      %s299 = scalar_lea.vmem %s5, %s298
      %s300 = sadd.s32 %s22, %s23
      %s301 = sadd.s32 %s22, %s23
      %p302 = scmp.lt.s32.totalorder %s301, 1
      %s303 = scalar_select %p302, %s301, 1
      %s304 = scalar_lea.vmem %s6, %s303
      %s305 = sadd.s32 %s22, %s23
      %v307 = vld [vmem:[%s285] sm:$0xf]
      %v308 = vld [vmem:[%s285 + $0x4] sm:$0xf]
      %v309 = vld [vmem:[%s1] sm:$0xff]
      %v310 = vld [vmem:[%s1 + $0x8] sm:$0xff]
      %v311 = vld [vmem:[%s1 + $0x10] sm:$0xff]
      %v312 = vld [vmem:[%s1 + $0x18] sm:$0x77]
      %v315 = vunpack.c.l.b16 %v307
      %v316 = vunpack.c.l.b16 %v308
      %v317 = vpack.c.b16 %v316, %v315
      %v322 = vunpack.c.l.b16 %v309
      %v323 = vunpack.c.h.b16 %v309
      %v324 = vunpack.c.l.b16 %v310
      %v325 = vunpack.c.h.b16 %v310
      %v326 = vunpack.c.l.b16 %v311
      %v327 = vunpack.c.h.b16 %v311
      %v328 = vunpack.c.l.b16 %v312
      %v329 = vunpack.c.h.b16 %v312
      %v330 = vpack.c.b16 %v324, %v322
      %v331 = vpack.c.b16 %v325, %v323
      %v332 = vpack.c.b16 %v328, %v326
      %v333 = vpack.c.b16 %v329, %v327
      %vm336 = vcmask 244736
      %v338 = vsel %vm336, %v317, 0
      %vm340 = vcmask 1046528
      %v342 = vsel %vm340, %v332, 0
      %v345 = vsel %vm340, %v333, 0
      %347 = vmatpush.bf16.msra.mxu0 0
      %348 = vmatpush.bf16.msra.mxu0 0
      %349 = vmatpush.bf16.msra.mxu0 0
      %350 = vmatpush.bf16.msra.mxu0 0
      %351 = vmatpush.bf16.msra.mxu0 0
      %352 = vmatpush.bf16.msra.mxu0 0
      %353 = vmatpush.bf16.msra.mxu0 %v342
      %354 = vmatpush.bf16.msra.mxu0 %v330
      %355 = vmatmul.bf16.gmra.mxu0 %v338
      %v356 = vpop.f32.mrf.mxu0
      %v357 = vadd.f32 0.0, %v356
      %v358 = vpop.f32.mrf.mxu0
      %v359 = vadd.f32 0.0, %v358
      %360 = vdwg.mxu0
      %361 = vmatpush.bf16.msra.mxu0 0
      %362 = vmatpush.bf16.msra.mxu0 0
      %363 = vmatpush.bf16.msra.mxu0 0
      %364 = vmatpush.bf16.msra.mxu0 0
      %365 = vmatpush.bf16.msra.mxu0 0
      %366 = vmatpush.bf16.msra.mxu0 0
      %367 = vmatpush.bf16.msra.mxu0 %v345
      %368 = vmatpush.bf16.msra.mxu0 %v331
      %369 = vmatmul.bf16.gmra.mxu0 %v338
      %v370 = vpop.f32.mrf.mxu0
      %v371 = vadd.f32 0.0, %v370
      %v372 = vpop.f32.mrf.mxu0
      %v373 = vadd.f32 0.0, %v372
      %374 = vdwg.mxu0
      %vm375 = vcmp.gt.f32.partialorder %v357, 0.0
      %vm376 = vcmp.gt.f32.partialorder %v371, 0.0
      %vm377 = vcmp.gt.f32.partialorder %v359, 0.0
      %vm378 = vcmp.gt.f32.partialorder %v373, 0.0
      %v379 = vmul.f32 %v357, 0.2
      %v380 = vmul.f32 %v371, 0.2
      %v381 = vmul.f32 %v359, 0.2
      %v382 = vmul.f32 %v373, 0.2
      %v383 = vsel %vm375, %v357, %v379
      %v384 = vsel %vm376, %v371, %v380
      %v385 = vsel %vm377, %v359, %v381
      %v386 = vsel %vm378, %v373, %v382
      %v387 = vpack.c.bf16 %v385, %v383
      %v388 = vpack.c.bf16 %v386, %v384
      %v389 = vld [vmem:[%s2] sm:$0xf]
      %v390 = vld [vmem:[%s2 + $0x4] sm:$0xf]
      %v391 = vld [vmem:[%s2 + $0x8] sm:$0xf]
      %v392 = vld [vmem:[%s2 + $0xc] sm:$0xf]
      %v393 = vld [vmem:[%s2 + $0x10] sm:$0xf]
      %v394 = vld [vmem:[%s2 + $0x14] sm:$0xf]
      %v395 = vld [vmem:[%s2 + $0x18] sm:$0xf]
      %v396 = vld [vmem:[%s2 + $0x1c] sm:$0xf]
      %v397 = vld [vmem:[%s2 + $0x20] sm:$0xf]
      %v398 = vld [vmem:[%s2 + $0x24] sm:$0xf]
      %v399 = vld [vmem:[%s2 + $0x28] sm:$0xf]
      %v400 = vld [vmem:[%s2 + $0x2c] sm:$0xf]
      %v401 = vld [vmem:[%s2 + $0x30] sm:$0xf]
      %v402 = vld [vmem:[%s2 + $0x34] sm:$0xf]
      %v403 = vld [vmem:[%s2 + $0x38] sm:$0xf]
      %v404 = vld [vmem:[%s2 + $0x3c] sm:$0xf]
      %v405 = vld [vmem:[%s2 + $0x40] sm:$0xf]
      %v406 = vld [vmem:[%s2 + $0x44] sm:$0xf]
      %v407 = vld [vmem:[%s2 + $0x48] sm:$0xf]
      %v408 = vld [vmem:[%s2 + $0x4c] sm:$0xf]
      %v409 = vld [vmem:[%s2 + $0x50] sm:$0xf]
      %v410 = vld [vmem:[%s2 + $0x54] sm:$0xf]
      %v411 = vld [vmem:[%s2 + $0x58] sm:$0xf]
      %v412 = vld [vmem:[%s2 + $0x5c] sm:$0xf]
      %v413 = vld [vmem:[%s3] sm:$0x1]
      %v415 = vperm.slane %v413, 0
      %v441 = vunpack.c.l.b16 %v389
      %v442 = vunpack.c.l.b16 %v390
      %v443 = vunpack.c.l.b16 %v391
      %v444 = vunpack.c.l.b16 %v392
      %v445 = vunpack.c.l.b16 %v393
      %v446 = vunpack.c.l.b16 %v394
      %v447 = vunpack.c.l.b16 %v395
      %v448 = vunpack.c.l.b16 %v396
      %v449 = vunpack.c.l.b16 %v397
      %v450 = vunpack.c.l.b16 %v398
      %v451 = vunpack.c.l.b16 %v399
      %v452 = vunpack.c.l.b16 %v400
      %v453 = vunpack.c.l.b16 %v401
      %v454 = vunpack.c.l.b16 %v402
      %v455 = vunpack.c.l.b16 %v403
      %v456 = vunpack.c.l.b16 %v404
      %v457 = vunpack.c.l.b16 %v405
      %v458 = vunpack.c.l.b16 %v406
      %v459 = vunpack.c.l.b16 %v407
      %v460 = vunpack.c.l.b16 %v408
      %v461 = vunpack.c.l.b16 %v409
      %v462 = vunpack.c.l.b16 %v410
      %v463 = vunpack.c.l.b16 %v411
      %v464 = vunpack.c.l.b16 %v412
      %v465 = vpack.c.b16 %v442, %v441
      %v466 = vpack.c.b16 %v444, %v443
      %v467 = vpack.c.b16 %v446, %v445
      %v468 = vpack.c.b16 %v448, %v447
      %v469 = vpack.c.b16 %v450, %v449
      %v470 = vpack.c.b16 %v452, %v451
      %v471 = vpack.c.b16 %v454, %v453
      %v472 = vpack.c.b16 %v456, %v455
      %v473 = vpack.c.b16 %v458, %v457
      %v474 = vpack.c.b16 %v460, %v459
      %v475 = vpack.c.b16 %v462, %v461
      %v476 = vpack.c.b16 %v464, %v463
      %vm489 = vcmask 523264
      %v491 = vsel %vm489, %v388, 0
      %493 = vmatpush.bf16.msra.mxu0 %v472
      %494 = vmatpush.bf16.msra.mxu0 %v471
      %495 = vmatpush.bf16.msra.mxu0 %v470
      %496 = vmatpush.bf16.msra.mxu0 %v469
      %497 = vmatpush.bf16.msra.mxu0 %v468
      %498 = vmatpush.bf16.msra.mxu0 %v467
      %499 = vmatpush.bf16.msra.mxu0 %v466
      %500 = vmatpush.bf16.msra.mxu0 %v465
      %501 = vmatmul.bf16.gmra.mxu0 %v387
      %v502 = vpop.f32.mrf.mxu0
      %v503 = vadd.f32 %v415, %v502
      %v504 = vpop.f32.mrf.mxu0
      %v505 = vadd.f32 %v415, %v504
      %506 = vdwg.mxu0
      %507 = vmatpush.bf16.msra.mxu0 0
      %508 = vmatpush.bf16.msra.mxu0 0
      %509 = vmatpush.bf16.msra.mxu0 0
      %510 = vmatpush.bf16.msra.mxu0 0
      %511 = vmatpush.bf16.msra.mxu0 %v476
      %512 = vmatpush.bf16.msra.mxu0 %v475
      %513 = vmatpush.bf16.msra.mxu0 %v474
      %514 = vmatpush.bf16.msra.mxu0 %v473
      %515 = vmatmul.bf16.gmra.mxu0 %v491
      %v516 = vpop.f32.mrf.mxu0
      %v517 = vadd.f32 %v503, %v516
      %v518 = vpop.f32.mrf.mxu0
      %v519 = vadd.f32 %v505, %v518
      %520 = vdwg.mxu0
      %v521 = vpack.c.bf16 %v517, %v517
      %v522 = vpack.c.bf16 %v519, %v519
      %523 = vst [vmem:[%s293] sm:$0xf] %v521
      %524 = vst [vmem:[%s293 + $0x4] sm:$0xf] %v522
      %v525 = vadd.f32 %v517, %v519
      %v526 = vrot.slane %v525, 4
      %v527 = vadd.f32 %v525, %v526
      %v528 = vrot.slane %v527, 2
      %v529 = vadd.f32 %v527, %v528
      %v530 = vrot.slane %v529, 1
      %v531 = vadd.f32 %v529, %v530
      %532 = vst [vmem:[%s299] sm:$0x1] %v531
      %v533 = vmul.f32 %v517, %v517
      %v534 = vmul.f32 %v519, %v519
      %v535 = vadd.f32 %v533, %v534
      %v536 = vrot.slane %v535, 4
      %v537 = vadd.f32 %v535, %v536
      %v538 = vrot.slane %v537, 2
      %v539 = vadd.f32 %v537, %v538
      %v540 = vrot.slane %v539, 1
      %v541 = vadd.f32 %v539, %v540
      %542 = vst [vmem:[%s304] sm:$0x1] %v541
      %s543 = sadd.s32 %s22, %s23
      %s544 = smul.u32 2, %s543
      %p545 = scmp.lt.s32.totalorder %s544, 3
      %s546 = scalar_select %p545, %s544, 3
      %s547 = smul.addr %s546, 4
      %s548 = scalar_lea.vmem %s4, %s547
      %s549 = sadd.s32 %s22, %s23
      %p550 = scmp.lt.s32.totalorder %s549, 1
      %s551 = scalar_select %p550, %s549, 1
      %s552 = scalar_lea.vmem %s5, %s551
      %s553 = sadd.s32 %s22, %s23
      %p554 = scmp.lt.s32.totalorder %s553, 1
      %s555 = scalar_select %p554, %s553, 1
      %s556 = scalar_lea.vmem %s6, %s555
      // Predicated region
      $region37: #{infogan_discriminator_forward.2} parent=35 // pred_check
        %p557 = pneg %p141
      $region38: #{infogan_discriminator_forward.2} parent=35 // pred_check_branch
        %559 = sbr.rel (%p557) target = $region40
      $region39: #{infogan_discriminator_forward.2} parent=35 // pred_region
        %s560 = sadd.s32 %s22, %s23
        %s561 = smul.u32 2, %s560
      $region40: #{infogan_discriminator_forward.2} parent=35 // pred_fallthru
        _
      // Predicated region
      $region41: #{infogan_discriminator_forward.2} parent=35 // pred_check
        %p562 = pneg %p169
      $region42: #{infogan_discriminator_forward.2} parent=35 // pred_check_branch
        %564 = sbr.rel (%p562) target = $region44
      $region43: #{infogan_discriminator_forward.2} parent=35 // pred_region
        %s565 = sadd.s32 %s22, %s23
      $region44: #{infogan_discriminator_forward.2} parent=35 // pred_fallthru
        _
      // Predicated region
      $region45: #{infogan_discriminator_forward.2} parent=35 // pred_check
        %p566 = pneg %p197
      $region46: #{infogan_discriminator_forward.2} parent=35 // pred_check_branch
        %568 = sbr.rel (%p566) target = $region48
      $region47: #{infogan_discriminator_forward.2} parent=35 // pred_region
        %s569 = sadd.s32 %s22, %s23
      $region48: #{infogan_discriminator_forward.2} parent=35 // pred_fallthru
        _
    $region36: #{infogan_discriminator_forward.2} parent=5 // pred_fallthru
      _
    %p570 = scmp.le.s32.totalorder 2, %s13
    // Predicated region
    $region49: #{infogan_discriminator_forward.2} parent=5 // pred_check
      %p571 = pneg %p570
    $region50: #{infogan_discriminator_forward.2} parent=5 // pred_check_branch
      %573 = sbr.rel (%p571) target = $region52
    $region51: #{infogan_discriminator_forward.2} parent=5 // pred_region
      %s574 = ssub.s32 %s13, 2
      // Predicated region
      $region53: #{infogan_discriminator_forward.2} parent=51 // pred_check
        %p575 = pneg %p147
      $region54: #{infogan_discriminator_forward.2} parent=51 // pred_check_branch
        %577 = sbr.rel (%p575) target = $region56
      $region55: #{infogan_discriminator_forward.2} parent=51 // pred_region
        %s578 = sadd.s32 %s24, %s25
        %s579 = smul.u32 2, %s578
        %p580 = scmp.lt.s32.totalorder %s579, 3
        %s581 = scalar_select %p580, %s579, 3
        %s582 = smul.addr %s581, 4
        %s583 = scalar_lea.vmem %s4, %s582
      $region56: #{infogan_discriminator_forward.2} parent=51 // pred_fallthru
        _
      // Predicated region
      $region57: #{infogan_discriminator_forward.2} parent=51 // pred_check
        %p584 = pneg %p175
      $region58: #{infogan_discriminator_forward.2} parent=51 // pred_check_branch
        %586 = sbr.rel (%p584) target = $region60
      $region59: #{infogan_discriminator_forward.2} parent=51 // pred_region
        %s587 = sadd.s32 %s24, %s25
        %p588 = scmp.lt.s32.totalorder %s587, 1
        %s589 = scalar_select %p588, %s587, 1
        %s590 = scalar_lea.vmem %s5, %s589
      $region60: #{infogan_discriminator_forward.2} parent=51 // pred_fallthru
        _
      // Predicated region
      $region61: #{infogan_discriminator_forward.2} parent=51 // pred_check
        %p591 = pneg %p203
      $region62: #{infogan_discriminator_forward.2} parent=51 // pred_check_branch
        %593 = sbr.rel (%p591) target = $region64
      $region63: #{infogan_discriminator_forward.2} parent=51 // pred_region
        %s594 = sadd.s32 %s24, %s25
        %p595 = scmp.lt.s32.totalorder %s594, 1
        %s596 = scalar_select %p595, %s594, 1
        %s597 = scalar_lea.vmem %s6, %s596
      $region64: #{infogan_discriminator_forward.2} parent=51 // pred_fallthru
        _
    $region52: #{infogan_discriminator_forward.2} parent=5 // pred_fallthru
      _
  $region6: #{infogan_discriminator_forward.2} parent=0 // loop_footer
    %s17 = sadd.s32 1, %s13
  $region7: #{infogan_discriminator_forward.2} parent=0 // loop_footer_branch
    %12 = sbr.rel target = $region3
  $region8: #{infogan_discriminator_forward.2} parent=0 // loop_exit
    _

// kernel: infogan_discriminator_forward.3
$region0: #{infogan_discriminator_forward.3}
  #allocation0 [shape = 'u32[]', space=smem, size = 0x4, offset = 0x4, fixed_abs, tag = 'smem constant byte address 0x4 - core index']
  #allocation1 [shape = 'u32[72,128]{1,0:T(1,128)}', space=vmem, size = 0x9000, scoped, tag = 'internal scratch']
  #allocation2 [shape = 'f32[2,10]{1,0:T(2,128)}', space=vmem, size = 0x400, scoped, tag = 'scratch operand']
  %s0 = inlined_call_operand.vmem [shape: bf16[2,2048], index: 0, kind: input, shape index: {}]
  %s1 = inlined_call_operand.vmem [shape: bf16[10,2048], index: 1, kind: input, shape index: {}]
  %s2 = inlined_call_operand.vmem [shape: f32[1,2048], index: 2, kind: input, shape index: {}]
  %s3 = inlined_call_operand.vmem [shape: f32[1,2048], index: 3, kind: input, shape index: {}]
  %s4 = inlined_call_operand.vmem [shape: f32[1,10], index: 4, kind: input, shape index: {}]
  %s5 = inlined_call_operand.vmem [shape: f32[2,1], index: 5, kind: output, shape index: {0}]
  %s6 = inlined_call_operand.hbm [shape: f32[2,4], index: 6, kind: output, shape index: {1}]
  %s7 = inlined_call_operand.hbm [shape: f32[2,5], index: 7, kind: output, shape index: {2}]
  %8 = xla_tuple %s5, %s6, %s7
  %s9 = sld [smem:[#allocation0]]
  $region54: #{infogan_discriminator_forward.3} parent=0
    _
  %s11 = ssub.s32 1, %s9
  %s12 = scalar_select 0, %s11, %s9
  $region1: #{infogan_discriminator_forward.3} parent=0
    #allocation3 [shape = 'u8[1024]{0}', space=vmem, size = 0x400, scoped, tag = 'output window, operand 1, single buffered']
    #allocation4 [shape = 's32[1]{0}', space=sflag, size = 0x4, scoped, tag = 'scoped memory for infogan_discriminator_forward.3']
    #allocation5 [shape = 'u8[1024]{0}', space=vmem, size = 0x400, scoped, tag = 'output window, operand 2, single buffered']
    #allocation6 [shape = 's32[1]{0}', space=sflag, size = 0x4, scoped, tag = 'scoped memory for infogan_discriminator_forward.3']
    %13 = vsyncpa [#allocation4], 0
    %14 = vsyncpa [#allocation6], 0
    // Predicated region
    $region2: #{infogan_discriminator_forward.3} parent=1 // pred_check
      _
    $region3: #{infogan_discriminator_forward.3} parent=1 // pred_check_branch
      %16 = sbr.rel (0) target = $region5
    $region4: #{infogan_discriminator_forward.3} parent=1 // pred_region
      _
    $region5: #{infogan_discriminator_forward.3} parent=1 // pred_fallthru
      _
    // Predicated region
    $region6: #{infogan_discriminator_forward.3} parent=1 // pred_check
      _
    $region7: #{infogan_discriminator_forward.3} parent=1 // pred_check_branch
      %18 = sbr.rel (0) target = $region9
    $region8: #{infogan_discriminator_forward.3} parent=1 // pred_region
      _
    $region9: #{infogan_discriminator_forward.3} parent=1 // pred_fallthru
      _
    // Predicated region
    $region10: #{infogan_discriminator_forward.3} parent=1 // pred_check
      _
    $region11: #{infogan_discriminator_forward.3} parent=1 // pred_check_branch
      %20 = sbr.rel (0) target = $region13
    $region12: #{infogan_discriminator_forward.3} parent=1 // pred_region
      _
    $region13: #{infogan_discriminator_forward.3} parent=1 // pred_fallthru
      _
    // Predicated region
    $region14: #{infogan_discriminator_forward.3} parent=1 // pred_check
      _
    $region15: #{infogan_discriminator_forward.3} parent=1 // pred_check_branch
      %22 = sbr.rel (0) target = $region17
    $region16: #{infogan_discriminator_forward.3} parent=1 // pred_region
      _
    $region17: #{infogan_discriminator_forward.3} parent=1 // pred_fallthru
      _
    // Predicated region
    $region18: #{infogan_discriminator_forward.3} parent=1 // pred_check
      _
    $region19: #{infogan_discriminator_forward.3} parent=1 // pred_check_branch
      %24 = sbr.rel (0) target = $region21
    $region20: #{infogan_discriminator_forward.3} parent=1 // pred_region
      _
    $region21: #{infogan_discriminator_forward.3} parent=1 // pred_fallthru
      _
    %p26 = scmp.eq.s32.totalorder 0, 0
    // Predicated region
    $region22: #{infogan_discriminator_forward.3} parent=1 // pred_check
      %p27 = pneg %p26
    $region23: #{infogan_discriminator_forward.3} parent=1 // pred_check_branch
      %29 = sbr.rel (%p27) target = $region25
    $region24: #{infogan_discriminator_forward.3} parent=1 // pred_region
      %vm30 = vcmask 74752
      %31 = vst.msk [vmem:[#allocation2] sm:$0x3] %vm30, 0.0
    $region25: #{infogan_discriminator_forward.3} parent=1 // pred_fallthru
      _
    %v32 = vld [vmem:[%s0] sm:$0xff]
    %v33 = vld [vmem:[%s0 + $0x8] sm:$0xff]
    %v34 = vld [vmem:[%s2] sm:$0xff]
    %v35 = vld [vmem:[%s2 + $0x8] sm:$0xff]
    %v36 = vunpack.c.l.bf16 %v32
    %v37 = vunpack.c.h.bf16 %v32
    %v38 = vunpack.c.l.bf16 %v33
    %v39 = vunpack.c.h.bf16 %v33
    %v42 = vperm.slane %v34, 0
    %v43 = vperm.slane %v34, 1
    %v44 = vperm.slane %v34, 2
    %v45 = vperm.slane %v34, 3
    %v46 = vperm.slane %v34, 4
    %v47 = vperm.slane %v34, 5
    %v48 = vperm.slane %v34, 6
    %v49 = vperm.slane %v34, 7
    %v50 = vperm.slane %v35, 0
    %v51 = vperm.slane %v35, 1
    %v52 = vperm.slane %v35, 2
    %v53 = vperm.slane %v35, 3
    %v54 = vperm.slane %v35, 4
    %v55 = vperm.slane %v35, 5
    %v56 = vperm.slane %v35, 6
    %v57 = vperm.slane %v35, 7
    %v58 = vrot.slane %v43, 6
    %v59 = vrot.slane %v44, 4
    %v60 = vrot.slane %v45, 2
    %v61 = vrot.slane %v47, 6
    %v62 = vrot.slane %v48, 4
    %v63 = vrot.slane %v49, 2
    %v64 = vrot.slane %v51, 6
    %v65 = vrot.slane %v52, 4
    %v66 = vrot.slane %v53, 2
    %v67 = vrot.slane %v55, 6
    %v68 = vrot.slane %v56, 4
    %v69 = vrot.slane %v57, 2
    %vm70 = vcmask 1041408
    %v71 = vsel %vm70, %v42, %v58
    %vm72 = vcmask 1045508
    %v73 = vsel %vm72, %v59, %v60
    %vm74 = vcmask 1043456
    %v75 = vsel %vm74, %v71, %v73
    %v76 = vsel %vm70, %v46, %v61
    %v77 = vsel %vm72, %v62, %v63
    %v78 = vsel %vm74, %v76, %v77
    %v79 = vsel %vm70, %v50, %v64
    %v80 = vsel %vm72, %v65, %v66
    %v81 = vsel %vm74, %v79, %v80
    %v82 = vsel %vm70, %v54, %v67
    %v83 = vsel %vm72, %v68, %v69
    %v84 = vsel %vm74, %v82, %v83
    %v89 = vmul.f32 %v36, %v75
    %v90 = vmul.f32 %v37, %v78
    %v91 = vmul.f32 %v38, %v81
    %v92 = vmul.f32 %v39, %v84
    %v93 = vld [vmem:[%s3] sm:$0xff]
    %v94 = vld [vmem:[%s3 + $0x8] sm:$0xff]
    %v97 = vperm.slane %v93, 0
    %v98 = vperm.slane %v93, 1
    %v99 = vperm.slane %v93, 2
    %v100 = vperm.slane %v93, 3
    %v101 = vperm.slane %v93, 4
    %v102 = vperm.slane %v93, 5
    %v103 = vperm.slane %v93, 6
    %v104 = vperm.slane %v93, 7
    %v105 = vperm.slane %v94, 0
    %v106 = vperm.slane %v94, 1
    %v107 = vperm.slane %v94, 2
    %v108 = vperm.slane %v94, 3
    %v109 = vperm.slane %v94, 4
    %v110 = vperm.slane %v94, 5
    %v111 = vperm.slane %v94, 6
    %v112 = vperm.slane %v94, 7
    %v113 = vrot.slane %v98, 6
    %v114 = vrot.slane %v99, 4
    %v115 = vrot.slane %v100, 2
    %v116 = vrot.slane %v102, 6
    %v117 = vrot.slane %v103, 4
    %v118 = vrot.slane %v104, 2
    %v119 = vrot.slane %v106, 6
    %v120 = vrot.slane %v107, 4
    %v121 = vrot.slane %v108, 2
    %v122 = vrot.slane %v110, 6
    %v123 = vrot.slane %v111, 4
    %v124 = vrot.slane %v112, 2
    %v125 = vsel %vm70, %v97, %v113
    %v126 = vsel %vm72, %v114, %v115
    %v127 = vsel %vm74, %v125, %v126
    %v128 = vsel %vm70, %v101, %v116
    %v129 = vsel %vm72, %v117, %v118
    %v130 = vsel %vm74, %v128, %v129
    %v131 = vsel %vm70, %v105, %v119
    %v132 = vsel %vm72, %v120, %v121
    %v133 = vsel %vm74, %v131, %v132
    %v134 = vsel %vm70, %v109, %v122
    %v135 = vsel %vm72, %v123, %v124
    %v136 = vsel %vm74, %v134, %v135
    %v141 = vadd.f32 %v89, %v127
    %v142 = vadd.f32 %v90, %v130
    %v143 = vadd.f32 %v91, %v133
    %v144 = vadd.f32 %v92, %v136
    %vm145 = vcmp.gt.f32.partialorder %v141, 0.0
    %vm146 = vcmp.gt.f32.partialorder %v142, 0.0
    %vm147 = vcmp.gt.f32.partialorder %v143, 0.0
    %vm148 = vcmp.gt.f32.partialorder %v144, 0.0
    %v149 = vmul.f32 %v141, 0.2
    %v150 = vmul.f32 %v142, 0.2
    %v151 = vmul.f32 %v143, 0.2
    %v152 = vmul.f32 %v144, 0.2
    %v153 = vsel %vm145, %v141, %v149
    %v154 = vsel %vm146, %v142, %v150
    %v155 = vsel %vm147, %v143, %v151
    %v156 = vsel %vm148, %v144, %v152
    %v157 = vld [vmem:[#allocation2] sm:$0x3]
    %162 = vst [vmem:[#allocation1] ss:$4 sm:$0xff] %v153
    %s163 = scalar_lea.vmem [#allocation1], 32
    %164 = vst [vmem:[%s163] ss:$4 sm:$0xff] %v154
    %v165 = vld.sshfl [vmem:[#allocation1] sm:$0xff pattern:$0x73625140]
    %v166 = vld.sshfl [vmem:[#allocation1 + $0x8] sm:$0xff pattern:$0x73625140]
    %v167 = vld.sshfl [vmem:[#allocation1 + $0x10] sm:$0xff pattern:$0x73625140]
    %v168 = vld.sshfl [vmem:[#allocation1 + $0x18] sm:$0xff pattern:$0x73625140]
    %v169 = vld.sshfl [vmem:[#allocation1 + $0x20] sm:$0xff pattern:$0x73625140]
    %v170 = vld.sshfl [vmem:[#allocation1 + $0x28] sm:$0xff pattern:$0x73625140]
    %v171 = vld.sshfl [vmem:[#allocation1 + $0x30] sm:$0xff pattern:$0x73625140]
    %v172 = vld.sshfl [vmem:[#allocation1 + $0x38] sm:$0xff pattern:$0x73625140]
    %173 = vst [vmem:[#allocation1] ss:$4 sm:$0xff] %v155
    %174 = vst [vmem:[%s163] ss:$4 sm:$0xff] %v156
    %v175 = vld.sshfl [vmem:[#allocation1] sm:$0xff pattern:$0x73625140]
    %v176 = vld.sshfl [vmem:[#allocation1 + $0x8] sm:$0xff pattern:$0x73625140]
    %v177 = vld.sshfl [vmem:[#allocation1 + $0x10] sm:$0xff pattern:$0x73625140]
    %v178 = vld.sshfl [vmem:[#allocation1 + $0x18] sm:$0xff pattern:$0x73625140]
    %v179 = vld.sshfl [vmem:[#allocation1 + $0x20] sm:$0xff pattern:$0x73625140]
    %v180 = vld.sshfl [vmem:[#allocation1 + $0x28] sm:$0xff pattern:$0x73625140]
    %v181 = vld.sshfl [vmem:[#allocation1 + $0x30] sm:$0xff pattern:$0x73625140]
    %v182 = vld.sshfl [vmem:[#allocation1 + $0x38] sm:$0xff pattern:$0x73625140]
    %v199 = vpack.c.bf16 %v165, %v165
    %v200 = vpack.c.bf16 %v166, %v166
    %v201 = vpack.c.bf16 %v167, %v167
    %v202 = vpack.c.bf16 %v168, %v168
    %v203 = vpack.c.bf16 %v169, %v169
    %v204 = vpack.c.bf16 %v170, %v170
    %v205 = vpack.c.bf16 %v171, %v171
    %v206 = vpack.c.bf16 %v172, %v172
    %v207 = vpack.c.bf16 %v175, %v175
    %v208 = vpack.c.bf16 %v176, %v176
    %v209 = vpack.c.bf16 %v177, %v177
    %v210 = vpack.c.bf16 %v178, %v178
    %v211 = vpack.c.bf16 %v179, %v179
    %v212 = vpack.c.bf16 %v180, %v180
    %v213 = vpack.c.bf16 %v181, %v181
    %v214 = vpack.c.bf16 %v182, %v182
    %v215 = vld [vmem:[%s1] sm:$0xff]
    %v216 = vld [vmem:[%s1 + $0x8] sm:$0xff]
    %v217 = vld [vmem:[%s1 + $0x10] sm:$0xff]
    %v218 = vld [vmem:[%s1 + $0x18] sm:$0xff]
    %v219 = vld [vmem:[%s1 + $0x20] sm:$0xff]
    %v220 = vld [vmem:[%s1 + $0x28] sm:$0xff]
    %v221 = vld [vmem:[%s1 + $0x30] sm:$0xff]
    %v222 = vld [vmem:[%s1 + $0x38] sm:$0xff]
    %v223 = vld [vmem:[%s1 + $0x40] sm:$0x11]
    %v224 = vld [vmem:[%s1 + $0x48] sm:$0x11]
    %v225 = vld [vmem:[%s1 + $0x50] sm:$0x11]
    %v226 = vld [vmem:[%s1 + $0x58] sm:$0x11]
    %v227 = vld [vmem:[%s1 + $0x60] sm:$0x11]
    %v228 = vld [vmem:[%s1 + $0x68] sm:$0x11]
    %v229 = vld [vmem:[%s1 + $0x70] sm:$0x11]
    %v230 = vld [vmem:[%s1 + $0x78] sm:$0x11]
    %v247 = vunpack.c.l.b16 %v215
    %v248 = vunpack.c.h.b16 %v215
    %v249 = vunpack.c.l.b16 %v216
    %v250 = vunpack.c.h.b16 %v216
    %v251 = vunpack.c.l.b16 %v217
    %v252 = vunpack.c.h.b16 %v217
    %v253 = vunpack.c.l.b16 %v218
    %v254 = vunpack.c.h.b16 %v218
    %v255 = vunpack.c.l.b16 %v219
    %v256 = vunpack.c.h.b16 %v219
    %v257 = vunpack.c.l.b16 %v220
    %v258 = vunpack.c.h.b16 %v220
    %v259 = vunpack.c.l.b16 %v221
    %v260 = vunpack.c.h.b16 %v221
    %v261 = vunpack.c.l.b16 %v222
    %v262 = vunpack.c.h.b16 %v222
    %v263 = vunpack.c.l.b16 %v223
    %v264 = vunpack.c.h.b16 %v223
    %v265 = vunpack.c.l.b16 %v224
    %v266 = vunpack.c.h.b16 %v224
    %v267 = vunpack.c.l.b16 %v225
    %v268 = vunpack.c.h.b16 %v225
    %v269 = vunpack.c.l.b16 %v226
    %v270 = vunpack.c.h.b16 %v226
    %v271 = vunpack.c.l.b16 %v227
    %v272 = vunpack.c.h.b16 %v227
    %v273 = vunpack.c.l.b16 %v228
    %v274 = vunpack.c.h.b16 %v228
    %v275 = vunpack.c.l.b16 %v229
    %v276 = vunpack.c.h.b16 %v229
    %v277 = vunpack.c.l.b16 %v230
    %v278 = vunpack.c.h.b16 %v230
    %v279 = vpack.c.b16 %v263, %v247
    %v280 = vpack.c.b16 %v264, %v248
    %v281 = vpack.c.b16 %v265, %v249
    %v282 = vpack.c.b16 %v266, %v250
    %v283 = vpack.c.b16 %v267, %v251
    %v284 = vpack.c.b16 %v268, %v252
    %v285 = vpack.c.b16 %v269, %v253
    %v286 = vpack.c.b16 %v270, %v254
    %v287 = vpack.c.b16 %v271, %v255
    %v288 = vpack.c.b16 %v272, %v256
    %v289 = vpack.c.b16 %v273, %v257
    %v290 = vpack.c.b16 %v274, %v258
    %v291 = vpack.c.b16 %v275, %v259
    %v292 = vpack.c.b16 %v276, %v260
    %v293 = vpack.c.b16 %v277, %v261
    %v294 = vpack.c.b16 %v278, %v262
    %311 = vmatpush.bf16.xpose.msra.mxu0 0
    %312 = vmatpush.bf16.xpose.msra.mxu0 0
    %313 = vmatpush.bf16.xpose.msra.mxu0 0
    %314 = vmatpush.bf16.xpose.msra.mxu0 0
    %315 = vmatpush.bf16.xpose.msra.mxu0 0
    %316 = vmatpush.bf16.xpose.msra.mxu0 0
    %317 = vmatpush.bf16.xpose.msra.mxu0 0
    %318 = vmatpush.bf16.xpose.msra.mxu0 %v279
    %319 = vmatmul.bf16.gmra.mxu0 %v199
    %v320 = vpop.f32.mrf.mxu0
    %v321 = vadd.f32 0.0, %v320
    %v322 = vpop.f32.mrf.mxu0
    %323 = vdwg.mxu0
    %324 = vmatpush.bf16.xpose.msra.mxu0 0
    %325 = vmatpush.bf16.xpose.msra.mxu0 0
    %326 = vmatpush.bf16.xpose.msra.mxu0 0
    %327 = vmatpush.bf16.xpose.msra.mxu0 0
    %328 = vmatpush.bf16.xpose.msra.mxu0 0
    %329 = vmatpush.bf16.xpose.msra.mxu0 0
    %330 = vmatpush.bf16.xpose.msra.mxu0 0
    %331 = vmatpush.bf16.xpose.msra.mxu0 %v280
    %332 = vmatmul.bf16.gmra.mxu0 %v200
    %v333 = vpop.f32.mrf.mxu0
    %v334 = vadd.f32 %v321, %v333
    %v335 = vpop.f32.mrf.mxu0
    %336 = vdwg.mxu0
    %337 = vmatpush.bf16.xpose.msra.mxu0 0
    %338 = vmatpush.bf16.xpose.msra.mxu0 0
    %339 = vmatpush.bf16.xpose.msra.mxu0 0
    %340 = vmatpush.bf16.xpose.msra.mxu0 0
    %341 = vmatpush.bf16.xpose.msra.mxu0 0
    %342 = vmatpush.bf16.xpose.msra.mxu0 0
    %343 = vmatpush.bf16.xpose.msra.mxu0 0
    %344 = vmatpush.bf16.xpose.msra.mxu0 %v281
    %345 = vmatmul.bf16.gmra.mxu0 %v201
    %v346 = vpop.f32.mrf.mxu0
    %v347 = vadd.f32 %v334, %v346
    %v348 = vpop.f32.mrf.mxu0
    %349 = vdwg.mxu0
    %350 = vmatpush.bf16.xpose.msra.mxu0 0
    %351 = vmatpush.bf16.xpose.msra.mxu0 0
    %352 = vmatpush.bf16.xpose.msra.mxu0 0
    %353 = vmatpush.bf16.xpose.msra.mxu0 0
    %354 = vmatpush.bf16.xpose.msra.mxu0 0
    %355 = vmatpush.bf16.xpose.msra.mxu0 0
    %356 = vmatpush.bf16.xpose.msra.mxu0 0
    %357 = vmatpush.bf16.xpose.msra.mxu0 %v282
    %358 = vmatmul.bf16.gmra.mxu0 %v202
    %v359 = vpop.f32.mrf.mxu0
    %v360 = vadd.f32 %v347, %v359
    %v361 = vpop.f32.mrf.mxu0
    %362 = vdwg.mxu0
    %363 = vmatpush.bf16.xpose.msra.mxu0 0
    %364 = vmatpush.bf16.xpose.msra.mxu0 0
    %365 = vmatpush.bf16.xpose.msra.mxu0 0
    %366 = vmatpush.bf16.xpose.msra.mxu0 0
    %367 = vmatpush.bf16.xpose.msra.mxu0 0
    %368 = vmatpush.bf16.xpose.msra.mxu0 0
    %369 = vmatpush.bf16.xpose.msra.mxu0 0
    %370 = vmatpush.bf16.xpose.msra.mxu0 %v283
    %371 = vmatmul.bf16.gmra.mxu0 %v203
    %v372 = vpop.f32.mrf.mxu0
    %v373 = vadd.f32 %v360, %v372
    %v374 = vpop.f32.mrf.mxu0
    %375 = vdwg.mxu0
    %376 = vmatpush.bf16.xpose.msra.mxu0 0
    %377 = vmatpush.bf16.xpose.msra.mxu0 0
    %378 = vmatpush.bf16.xpose.msra.mxu0 0
    %379 = vmatpush.bf16.xpose.msra.mxu0 0
    %380 = vmatpush.bf16.xpose.msra.mxu0 0
    %381 = vmatpush.bf16.xpose.msra.mxu0 0
    %382 = vmatpush.bf16.xpose.msra.mxu0 0
    %383 = vmatpush.bf16.xpose.msra.mxu0 %v284
    %384 = vmatmul.bf16.gmra.mxu0 %v204
    %v385 = vpop.f32.mrf.mxu0
    %v386 = vadd.f32 %v373, %v385
    %v387 = vpop.f32.mrf.mxu0
    %388 = vdwg.mxu0
    %389 = vmatpush.bf16.xpose.msra.mxu0 0
    %390 = vmatpush.bf16.xpose.msra.mxu0 0
    %391 = vmatpush.bf16.xpose.msra.mxu0 0
    %392 = vmatpush.bf16.xpose.msra.mxu0 0
    %393 = vmatpush.bf16.xpose.msra.mxu0 0
    %394 = vmatpush.bf16.xpose.msra.mxu0 0
    %395 = vmatpush.bf16.xpose.msra.mxu0 0
    %396 = vmatpush.bf16.xpose.msra.mxu0 %v285
    %397 = vmatmul.bf16.gmra.mxu0 %v205
    %v398 = vpop.f32.mrf.mxu0
    %v399 = vadd.f32 %v386, %v398
    %v400 = vpop.f32.mrf.mxu0
    %401 = vdwg.mxu0
    %402 = vmatpush.bf16.xpose.msra.mxu0 0
    %403 = vmatpush.bf16.xpose.msra.mxu0 0
    %404 = vmatpush.bf16.xpose.msra.mxu0 0
    %405 = vmatpush.bf16.xpose.msra.mxu0 0
    %406 = vmatpush.bf16.xpose.msra.mxu0 0
    %407 = vmatpush.bf16.xpose.msra.mxu0 0
    %408 = vmatpush.bf16.xpose.msra.mxu0 0
    %409 = vmatpush.bf16.xpose.msra.mxu0 %v286
    %410 = vmatmul.bf16.gmra.mxu0 %v206
    %v411 = vpop.f32.mrf.mxu0
    %v412 = vadd.f32 %v399, %v411
    %v413 = vpop.f32.mrf.mxu0
    %414 = vdwg.mxu0
    %415 = vmatpush.bf16.xpose.msra.mxu0 0
    %416 = vmatpush.bf16.xpose.msra.mxu0 0
    %417 = vmatpush.bf16.xpose.msra.mxu0 0
    %418 = vmatpush.bf16.xpose.msra.mxu0 0
    %419 = vmatpush.bf16.xpose.msra.mxu0 0
    %420 = vmatpush.bf16.xpose.msra.mxu0 0
    %421 = vmatpush.bf16.xpose.msra.mxu0 0
    %422 = vmatpush.bf16.xpose.msra.mxu0 %v287
    %423 = vmatmul.bf16.gmra.mxu0 %v207
    %v424 = vpop.f32.mrf.mxu0
    %v425 = vadd.f32 %v412, %v424
    %v426 = vpop.f32.mrf.mxu0
    %427 = vdwg.mxu0
    %428 = vmatpush.bf16.xpose.msra.mxu0 0
    %429 = vmatpush.bf16.xpose.msra.mxu0 0
    %430 = vmatpush.bf16.xpose.msra.mxu0 0
    %431 = vmatpush.bf16.xpose.msra.mxu0 0
    %432 = vmatpush.bf16.xpose.msra.mxu0 0
    %433 = vmatpush.bf16.xpose.msra.mxu0 0
    %434 = vmatpush.bf16.xpose.msra.mxu0 0
    %435 = vmatpush.bf16.xpose.msra.mxu0 %v288
    %436 = vmatmul.bf16.gmra.mxu0 %v208
    %v437 = vpop.f32.mrf.mxu0
    %v438 = vadd.f32 %v425, %v437
    %v439 = vpop.f32.mrf.mxu0
    %440 = vdwg.mxu0
    %441 = vmatpush.bf16.xpose.msra.mxu0 0
    %442 = vmatpush.bf16.xpose.msra.mxu0 0
    %443 = vmatpush.bf16.xpose.msra.mxu0 0
    %444 = vmatpush.bf16.xpose.msra.mxu0 0
    %445 = vmatpush.bf16.xpose.msra.mxu0 0
    %446 = vmatpush.bf16.xpose.msra.mxu0 0
    %447 = vmatpush.bf16.xpose.msra.mxu0 0
    %448 = vmatpush.bf16.xpose.msra.mxu0 %v289
    %449 = vmatmul.bf16.gmra.mxu0 %v209
    %v450 = vpop.f32.mrf.mxu0
    %v451 = vadd.f32 %v438, %v450
    %v452 = vpop.f32.mrf.mxu0
    %453 = vdwg.mxu0
    %454 = vmatpush.bf16.xpose.msra.mxu0 0
    %455 = vmatpush.bf16.xpose.msra.mxu0 0
    %456 = vmatpush.bf16.xpose.msra.mxu0 0
    %457 = vmatpush.bf16.xpose.msra.mxu0 0
    %458 = vmatpush.bf16.xpose.msra.mxu0 0
    %459 = vmatpush.bf16.xpose.msra.mxu0 0
    %460 = vmatpush.bf16.xpose.msra.mxu0 0
    %461 = vmatpush.bf16.xpose.msra.mxu0 %v290
    %462 = vmatmul.bf16.gmra.mxu0 %v210
    %v463 = vpop.f32.mrf.mxu0
    %v464 = vadd.f32 %v451, %v463
    %v465 = vpop.f32.mrf.mxu0
    %466 = vdwg.mxu0
    %467 = vmatpush.bf16.xpose.msra.mxu0 0
    %468 = vmatpush.bf16.xpose.msra.mxu0 0
    %469 = vmatpush.bf16.xpose.msra.mxu0 0
    %470 = vmatpush.bf16.xpose.msra.mxu0 0
    %471 = vmatpush.bf16.xpose.msra.mxu0 0
    %472 = vmatpush.bf16.xpose.msra.mxu0 0
    %473 = vmatpush.bf16.xpose.msra.mxu0 0
    %474 = vmatpush.bf16.xpose.msra.mxu0 %v291
    %475 = vmatmul.bf16.gmra.mxu0 %v211
    %v476 = vpop.f32.mrf.mxu0
    %v477 = vadd.f32 %v464, %v476
    %v478 = vpop.f32.mrf.mxu0
    %479 = vdwg.mxu0
    %480 = vmatpush.bf16.xpose.msra.mxu0 0
    %481 = vmatpush.bf16.xpose.msra.mxu0 0
    %482 = vmatpush.bf16.xpose.msra.mxu0 0
    %483 = vmatpush.bf16.xpose.msra.mxu0 0
    %484 = vmatpush.bf16.xpose.msra.mxu0 0
    %485 = vmatpush.bf16.xpose.msra.mxu0 0
    %486 = vmatpush.bf16.xpose.msra.mxu0 0
    %487 = vmatpush.bf16.xpose.msra.mxu0 %v292
    %488 = vmatmul.bf16.gmra.mxu0 %v212
    %v489 = vpop.f32.mrf.mxu0
    %v490 = vadd.f32 %v477, %v489
    %v491 = vpop.f32.mrf.mxu0
    %492 = vdwg.mxu0
    %493 = vmatpush.bf16.xpose.msra.mxu0 0
    %494 = vmatpush.bf16.xpose.msra.mxu0 0
    %495 = vmatpush.bf16.xpose.msra.mxu0 0
    %496 = vmatpush.bf16.xpose.msra.mxu0 0
    %497 = vmatpush.bf16.xpose.msra.mxu0 0
    %498 = vmatpush.bf16.xpose.msra.mxu0 0
    %499 = vmatpush.bf16.xpose.msra.mxu0 0
    %500 = vmatpush.bf16.xpose.msra.mxu0 %v293
    %501 = vmatmul.bf16.gmra.mxu0 %v213
    %v502 = vpop.f32.mrf.mxu0
    %v503 = vadd.f32 %v490, %v502
    %v504 = vpop.f32.mrf.mxu0
    %505 = vdwg.mxu0
    %506 = vmatpush.bf16.xpose.msra.mxu0 0
    %507 = vmatpush.bf16.xpose.msra.mxu0 0
    %508 = vmatpush.bf16.xpose.msra.mxu0 0
    %509 = vmatpush.bf16.xpose.msra.mxu0 0
    %510 = vmatpush.bf16.xpose.msra.mxu0 0
    %511 = vmatpush.bf16.xpose.msra.mxu0 0
    %512 = vmatpush.bf16.xpose.msra.mxu0 0
    %513 = vmatpush.bf16.xpose.msra.mxu0 %v294
    %514 = vmatmul.bf16.gmra.mxu0 %v214
    %v515 = vpop.f32.mrf.mxu0
    %v516 = vadd.f32 %v503, %v515
    %v517 = vpop.f32.mrf.mxu0
    %518 = vdwg.mxu0
    %v519 = vadd.f32 %v157, %v516
    %vm520 = vcmask 74752
    %521 = vst.msk [vmem:[#allocation2] sm:$0x3] %vm520, %v519
    // Predicated region
    $region26: #{infogan_discriminator_forward.3} parent=1 // pred_check
      %p522 = pneg %p26
    $region27: #{infogan_discriminator_forward.3} parent=1 // pred_check_branch
      %524 = sbr.rel (%p522) target = $region29
    $region28: #{infogan_discriminator_forward.3} parent=1 // pred_region
      %v525 = vld [vmem:[#allocation2] sm:$0x3]
      %v526 = vld [vmem:[%s4] sm:$0x1]
      %v528 = vperm.slane %v526, 0
      %v530 = vadd.f32 %v525, %v528
      %v531 = vand.u32 2147483647, %v530
      %v532 = vsub.f32 0.0, %v531
      %v533 = vmul.f32 %v532, 1.442695
      %v534 = vpow.pop %v533
      %v535 = vadd.f32 %v534, 1.0
      %v536 = vrcp.pop %v535
      %v537 = vmul.f32 %v535, %v536
      %v538 = vsub.f32 1.0, %v537
      %v539 = vmul.f32 %v536, %v538
      %v540 = vadd.f32 %v536, %v539
      %vm541 = vweird.f32 %v535
      %vm542 = vweird.f32 %v536
      %vm543 = vmor %vm541, %vm542
      %v544 = vsel %vm543, %v536, %v540
      %v545 = vand.u32 2147483647, %v535
      %vm546 = vcmp.eq.f32.partialorder %v545, 8.507059e+37
      %v547 = vand.u32 %v535, 2147483648
      %v548 = vor.u32 1.1754944e-38, %v547
      %v549 = vsel %vm546, %v548, %v544
      %v550 = vmul.f32 1.0, %v549
      %vm551 = vcmp.ge.f32.partialorder %v530, 0.0
      %v552 = vsub.f32 1.0, %v550
      %v553 = vsel %vm551, %v550, %v552
      %vm554 = vcmask 1024
      %555 = vst.msk [vmem:[%s5] sm:$0x3] %vm554, %v553
      %vm556 = vcmask 33800
      %v557 = vsel %vm556, %v530, -inf
      %558 = vmax.xlane.f32.xlu0 %v557
      %v559 = vpop.xlane.xlu0 %558
      %v560 = vsub.f32 %v530, %v559
      %v561 = vmul.f32 %v560, 1.442695
      %v562 = vpow.pop %v561
      %564 = vrot.lane.b32.xlu0 %v562, 127
      %v565 = vpop.permute.xlu0 %564
      %vm567 = vcmask 25600
      %v568 = vsel %vm567, %v565, 0.0
      %569 = vadd.xlane.f32.xlu0 %v568
      %v570 = vpop.xlane.xlu0 %569
      %v571 = vrcp.pop %v570
      %v572 = vmul.f32 %v570, %v571
      %v573 = vsub.f32 1.0, %v572
      %v574 = vmul.f32 %v571, %v573
      %v575 = vadd.f32 %v571, %v574
      %vm576 = vweird.f32 %v570
      %vm577 = vweird.f32 %v571
      %vm578 = vmor %vm576, %vm577
      %v579 = vsel %vm578, %v571, %v575
      %v580 = vand.u32 2147483647, %v570
      %vm581 = vcmp.eq.f32.partialorder %v580, 8.507059e+37
      %v582 = vand.u32 %v570, 2147483648
      %v583 = vor.u32 1.1754944e-38, %v582
      %v584 = vsel %vm581, %v583, %v579
      %v585 = vmul.f32 %v562, %v584
      %587 = vrot.lane.b32.xlu0 %v585, 127
      %v588 = vpop.permute.xlu0 %587
      %590 = vst.msk [vmem:[#allocation3] sm:$0x3] %vm567, %v588
      %592 = vrot.lane.b32.xlu0 %v530, 123
      %v593 = vpop.permute.xlu0 %592
      %vm595 = vcmask 33792
      %596 = vst.msk [vmem:[#allocation5] sm:$0x3] %vm595, %v593
    $region29: #{infogan_discriminator_forward.3} parent=1 // pred_fallthru
      _
    // Predicated region
    $region30: #{infogan_discriminator_forward.3} parent=1 // pred_check
      _
    $region31: #{infogan_discriminator_forward.3} parent=1 // pred_check_branch
      %598 = sbr.rel (0) target = $region33
    $region32: #{infogan_discriminator_forward.3} parent=1 // pred_region
      _
    $region33: #{infogan_discriminator_forward.3} parent=1 // pred_fallthru
      _
    // Predicated region
    $region34: #{infogan_discriminator_forward.3} parent=1 // pred_check
      _
    $region35: #{infogan_discriminator_forward.3} parent=1 // pred_check_branch
      %600 = sbr.rel (0) target = $region37
    $region36: #{infogan_discriminator_forward.3} parent=1 // pred_region
      %602 = vsyncadd [#allocation4], 0
      %s604 = sshll.u32 [#allocation3], 4
      %s605 = int_to_ptr.vmem [resolvable:$true] %s604
      %s606 = sshll.u32 %s6, 4
      %s607 = int_to_ptr.hbm [resolvable:$true] %s606
      %609 = dma.vmem_to_hbm [thread:$0]  %s605, 32, %s607, [#allocation4]
    $region37: #{infogan_discriminator_forward.3} parent=1 // pred_fallthru
      _
    // Predicated region
    $region38: #{infogan_discriminator_forward.3} parent=1 // pred_check
      _
    $region39: #{infogan_discriminator_forward.3} parent=1 // pred_check_branch
      %611 = sbr.rel (0) target = $region41
    $region40: #{infogan_discriminator_forward.3} parent=1 // pred_region
      %613 = vsyncadd [#allocation6], 0
      %s615 = sshll.u32 [#allocation5], 4
      %s616 = int_to_ptr.vmem [resolvable:$true] %s615
      %s617 = sshll.u32 %s7, 4
      %s618 = int_to_ptr.hbm [resolvable:$true] %s617
      %620 = dma.vmem_to_hbm [thread:$0]  %s616, 32, %s618, [#allocation6]
    $region41: #{infogan_discriminator_forward.3} parent=1 // pred_fallthru
      _
    // Predicated region
    $region42: #{infogan_discriminator_forward.3} parent=1 // pred_check
      _
    $region43: #{infogan_discriminator_forward.3} parent=1 // pred_check_branch
      %622 = sbr.rel (0) target = $region45
    $region44: #{infogan_discriminator_forward.3} parent=1 // pred_region
      _
    $region45: #{infogan_discriminator_forward.3} parent=1 // pred_fallthru
      _
    // Predicated region
    $region46: #{infogan_discriminator_forward.3} parent=1 // pred_check
      _
    $region47: #{infogan_discriminator_forward.3} parent=1 // pred_check_branch
      %624 = sbr.rel (0) target = $region49
    $region48: #{infogan_discriminator_forward.3} parent=1 // pred_region
      %626 = dma.done [#allocation4], 32
    $region49: #{infogan_discriminator_forward.3} parent=1 // pred_fallthru
      _
    // Predicated region
    $region50: #{infogan_discriminator_forward.3} parent=1 // pred_check
      _
    $region51: #{infogan_discriminator_forward.3} parent=1 // pred_check_branch
      %628 = sbr.rel (0) target = $region53
    $region52: #{infogan_discriminator_forward.3} parent=1 // pred_region
      %630 = dma.done [#allocation6], 32
    $region53: #{infogan_discriminator_forward.3} parent=1 // pred_fallthru
      _
    %631 = vsyncpa [#allocation4], 1
    %632 = vsyncpa [#allocation6], 1

</llo_original>
